<compile_context>
chip_gen: v5e
topology: v5e:2x2
jax: 0.10.0
libtpu: 0.0.40
codegen_flags: <defaults>
</compile_context>

<pallas_src>
import jax
import jax.numpy as jnp
from jax.experimental import pallas as pl
from jax.experimental.pallas import tpu as pltpu

LN_EPS = 1e-5  # torch.nn.LayerNorm default


# --------------------------------------------------------------------------
# Kernel
# --------------------------------------------------------------------------
def _ada_gnn_kernel(x_ref, params_ref, w_ref, o_ref):
    """Fused LayerNorm -> ReLU -> (dropout p=0) -> Linear -> + residual.

    x_ref:      (tm, H)  row tile (full hidden dim: LN reduces over it)
    params_ref: (3, H)   packed [gamma; beta; bias], f32
    w_ref:      (H, tn)  out-feature tile of W, bf16
    o_ref:      (tm, tn)
    """
    h_dim = x_ref.shape[-1]
    tn = o_ref.shape[-1]

    x = x_ref[...].astype(jnp.float32)
    params = params_ref[...]

    # ---- LayerNorm over the hidden (last) dim, f32 VPU math ----
    mean = jnp.mean(x, axis=-1, keepdims=True)
    centered = x - mean
    var = jnp.mean(centered * centered, axis=-1, keepdims=True)
    h = centered * jax.lax.rsqrt(var + LN_EPS)
    h = h * params[0:1, :] + params[1:2, :]          # affine (broadcast over rows)

    # ---- ReLU ----
    h = jnp.maximum(h, 0.0)

    # ---- Dropout: p = 0.0 (module default) -> identity ----
    # TODO(synk): stochastic dropout for p > 0 would use pltpu.prng_random_bits.

    # ---- Linear: bf16 MXU inputs, f32 accumulation ----
    y = jnp.dot(h.astype(jnp.bfloat16), w_ref[...],
                preferred_element_type=jnp.float32)

    if tn == h_dim:
        # Resident-W path (single out-feature tile).
        bias = params[2:3, :]
        x_res = x
    else:
        # Out-feature-tiled path (large-H escape hatch).
        col0 = pl.multiple_of(pl.program_id(1) * tn, 128)
        bias = params_ref[2:3, pl.ds(col0, tn)]
        x_res = x_ref[:, pl.ds(col0, tn)].astype(jnp.float32)

    # ---- Residual ----
    o_ref[...] = (y + bias + x_res).astype(o_ref.dtype)


# --------------------------------------------------------------------------
# Tiling / VMEM heuristics
# --------------------------------------------------------------------------
def _vmem_capacity_bytes():
    try:
        return int(pltpu.get_tpu_info().vmem_capacity_bytes)
    except Exception:
        return 64 << 20  # conservative default (v7x per-TensorCore VMEM)


def _choose_tiles(n_rows, h, x_bytes, out_bytes, w_bytes, vmem_budget,
                  *, tm=None, tn=None, tm_max=4096, min_tm=8):
    """Pick (tm, tn) and estimate resident VMEM."""
    # ---- out-feature tile tn: keep W fully resident unless it blows the budget.
    w_budget = max(vmem_budget // 4, 4 << 20)
    if tn is None:
        if h % 128 != 0 or h * h * w_bytes <= w_budget:
            tn = h
        else:
            tn = min(h, max(128, ((w_budget // (2 * h * w_bytes)) // 128) * 128))
    # Resident (tn == h) W is single-buffered (pl.Buffered(1)); tiled W is
    # double-buffered by the pipeline.
    w_vmem = h * tn * w_bytes * (1 if tn == h else 2)
    fixed = w_vmem + 8 * h * 4                    # + sublane-padded (3,H) params

    # Per-row VMEM: double-buffered x tile, double-buffered out tile, plus a
    # generous allowance for in-kernel f32 temporaries (x, h, y).
    per_row = 2 * h * x_bytes + 2 * tn * out_bytes + 4 * h * 4

    if tm is None:
        tm = tm_max
        while tm > min_tm and fixed + tm * per_row > vmem_budget:
            tm //= 2
        if n_rows <= 2 * tm:
            # Split the *real* rows ~evenly across two grid steps (two v7x
            # TensorCores) instead of padding; the partial last block is
            # masked on store by Pallas.
            half = pl.cdiv(n_rows, 2)
            tm = max(min(tm, pl.cdiv(half, min_tm) * min_tm), min_tm)

    vmem_need = fixed + tm * per_row
    return tm, tn, vmem_need


# --------------------------------------------------------------------------
# Wrappers
# --------------------------------------------------------------------------
def prepare_ada_gnn_params(gamma, beta, w, b):
    """One-time parameter packing (call at layer init, reuse every step).

    Returns (params[3,H] f32, W[H,H] bf16).  Hoisting this out of the per-call
    path avoids re-reading/re-casting the params from HBM on every layer call.
    """
    params = jnp.stack([gamma, beta, b]).astype(jnp.float32)  # (3, H)
    return params, w.astype(jnp.bfloat16)


def ada_gnn_layer_prepared(x, prepared, *, fixed=False, tm=None, tn=None,
                           out_dtype=None):
    """Forward pass with pre-packed params.  x: [N, H] (f32 or bf16)."""
    if fixed:
        return x  # fixed == True branch: identity

    params, w_bf16 = prepared
    N, H = x.shape
    assert params.shape == (3, H)
    assert w_bf16.shape == (H, H), "residual h + x requires a square Linear"
    if out_dtype is None:
        out_dtype = x.dtype

    x_bytes = jnp.dtype(x.dtype).itemsize
    out_bytes = jnp.dtype(out_dtype).itemsize
    min_tm = 16 if min(x_bytes, out_bytes) < 4 else 8   # bf16 native (16,128) tile

    capacity = _vmem_capacity_bytes()
    vmem_budget = capacity // 2          # ~64 MiB on v5e/v6e, ~32 MiB on v7x
    tm, tn, vmem_need = _choose_tiles(N, H, x_bytes, out_bytes, 2, vmem_budget,
                                      tm=tm, tn=tn, min_tm=min_tm)
    assert H % tn == 0
    vmem_limit = int(min(max(vmem_need + (8 << 20), 32 << 20),
                         (capacity * 3) // 4))

    grid = (pl.cdiv(N, tm), H // tn)     # no padding: partial last row block

    def call(single_buffer_const):
        def const_spec(shape):
            # Grid-invariant block: double-buffering it is pure VMEM waste.
            if single_buffer_const:
                return pl.BlockSpec(shape, lambda i, j: (0, 0),
                                    pipeline_mode=pl.Buffered(1))
            return pl.BlockSpec(shape, lambda i, j: (0, 0))

        w_spec = (const_spec((H, tn)) if tn == H
                  else pl.BlockSpec((H, tn), lambda i, j: (0, j)))

        return pl.pallas_call(
            _ada_gnn_kernel,
            out_shape=jax.ShapeDtypeStruct((N, H), out_dtype),
            grid_spec=pltpu.PrefetchScalarGridSpec(
                num_scalar_prefetch=0,
                grid=grid,
                in_specs=[
                    pl.BlockSpec((tm, H), lambda i, j: (i, 0)),  # x rows (full H)
                    const_spec((3, H)),                           # gamma/beta/bias
                    w_spec,                                       # W (bf16)
                ],
                out_specs=pl.BlockSpec((tm, tn), lambda i, j: (i, j)),
            ),
            compiler_params=pltpu.CompilerParams(
                dimension_semantics=("parallel", "parallel"),
                vmem_limit_bytes=vmem_limit),
        )(x, params, w_bf16)

    try:
        return call(single_buffer_const=True)
    except Exception:
        # pipeline_mode=pl.Buffered(1) not supported by this jax/Mosaic build:
        # fall back to default double-buffering (correctness identical).
        return call(single_buffer_const=False)


def ada_gnn_layer(x, gamma, beta, w, b, *, fixed=False, tm=None, tn=None,
                  out_dtype=None):
    """Convenience wrapper; prefer prepare_ada_gnn_params + *_prepared in loops."""
    if fixed:
        return x
    prepared = prepare_ada_gnn_params(gamma, beta, w, b)
    return ada_gnn_layer_prepared(x, prepared, tm=tm, tn=tn, out_dtype=out_dtype)


# --------------------------------------------------------------------------
# References
# --------------------------------------------------------------------------
def _reference_quantized(x, gamma, beta, w, b, out_dtype=None):
    """Reference matching the kernel's bf16-matmul quantization."""
    if out_dtype is None:
        out_dtype = x.dtype
    xf = x.astype(jnp.float32)
    mean = jnp.mean(xf, axis=-1, keepdims=True)
    var = jnp.mean((xf - mean) ** 2, axis=-1, keepdims=True)
    h = (xf - mean) * jax.lax.rsqrt(var + LN_EPS)
    h = h * gamma + beta
    h = jnp.maximum(h, 0.0)
    y = jnp.dot(h.astype(jnp.bfloat16), w.astype(jnp.bfloat16),
                preferred_element_type=jnp.float32) + b
    return (y + xf).astype(out_dtype)


def _reference_f32(x, gamma, beta, w, b):
    """Pure-f32 module semantics (loose check; kernel uses bf16 MXU inputs)."""
    xf = x.astype(jnp.float32)
    mean = jnp.mean(xf, axis=-1, keepdims=True)
    var = jnp.mean((xf - mean) ** 2, axis=-1, keepdims=True)
    h = (xf - mean) * jax.lax.rsqrt(var + LN_EPS)
    h = h * gamma + beta
    h = jnp.maximum(h, 0.0)
    h = h @ w + b
    return h + xf


# --------------------------------------------------------------------------
# Demo / self-test
# --------------------------------------------------------------------------
if __name__ == "__main__":
    key = jax.random.PRNGKey(0)

    # ---- Case 1: H=128, N=300 (non-multiple of any tile -> partial block) ----
    N, H = 300, 128
    kx, kg, kb, kw, kbias = jax.random.split(key, 5)
    x = jax.random.normal(kx, (N, H), dtype=jnp.float32)
    gamma = jnp.ones((H,), jnp.float32) + 0.01 * jax.random.normal(kg, (H,), jnp.float32)
    beta = 0.01 * jax.random.normal(kb, (H,), jnp.float32)
    w = (1.0 / jnp.sqrt(H)) * jax.random.normal(kw, (H, H), jnp.float32)
    b = 0.01 * jax.random.normal(kbias, (H,), jnp.float32)

    prep = prepare_ada_gnn_params(gamma, beta, w, b)

    # fixed == True path (identity)
    out_fixed = ada_gnn_layer_prepared(x, prep, fixed=True)
    assert out_fixed is x
    assert ada_gnn_layer(x, gamma, beta, w, b, fixed=True) is x

    # unfixed path, f32 HBM I/O
    out = jax.block_until_ready(ada_gnn_layer_prepared(x, prep))
    assert out.shape == (N, H)
    ref_q = _reference_quantized(x, gamma, beta, w, b)
    assert jnp.allclose(out, ref_q, atol=2e-4, rtol=2e-4), (
        float(jnp.max(jnp.abs(out - ref_q))))
    ref_f32 = _reference_f32(x, gamma, beta, w, b)
    assert jnp.allclose(out, ref_f32, atol=5e-2, rtol=5e-2), (
        float(jnp.max(jnp.abs(out - ref_f32))))

    # unfixed path, bf16 HBM I/O (halves read+write bytes; primary mem-bound win)
    x_bf16 = x.astype(jnp.bfloat16)
    out_bf16 = jax.block_until_ready(ada_gnn_layer_prepared(x_bf16, prep))
    ref_bf16 = _reference_quantized(x_bf16, gamma, beta, w, b, out_dtype=jnp.bfloat16)
    diff = jnp.abs(out_bf16.astype(jnp.float32) - ref_bf16.astype(jnp.float32))
    assert jnp.allclose(out_bf16.astype(jnp.float32), ref_bf16.astype(jnp.float32),
                        atol=2e-2, rtol=2e-2), float(jnp.max(diff))

    # ---- Case 2: out-feature-tiled (large-H escape hatch), forced tn < H ----
    N2, H2 = 192, 256
    k2 = jax.random.split(key, 6)
    x2 = jax.random.normal(k2[0], (N2, H2), dtype=jnp.float32)
    gamma2 = jnp.ones((H2,), jnp.float32) + 0.01 * jax.random.normal(k2[1], (H2,))
    beta2 = 0.01 * jax.random.normal(k2[2], (H2,))
    w2 = (1.0 / jnp.sqrt(H2)) * jax.random.normal(k2[3], (H2, H2), jnp.float32)
    b2 = 0.01 * jax.random.normal(k2[4], (H2,))
    prep2 = prepare_ada_gnn_params(gamma2, beta2, w2, b2)

    out2 = jax.block_until_ready(ada_gnn_layer_prepared(x2, prep2, tn=128))
    ref2 = _reference_quantized(x2, gamma2, beta2, w2, b2)
    assert jnp.allclose(out2, ref2, atol=5e-4, rtol=2e-4), (
        float(jnp.max(jnp.abs(out2 - ref2))))

    print("KERNEL_OK")
</pallas_src>

<mosaic_0001>
module attributes {stable_mosaic.version = 11 : i64} {
  func.func @_ada_gnn_kernel(%arg0: i32, %arg1: i32, %arg2: memref<152x128xf32, #tpu.memory_space<vmem>>, %arg3: memref<3x128xf32, #tpu.memory_space<vmem>>, %arg4: memref<128x128xbf16, #tpu.memory_space<vmem>>, %arg5: memref<152x128xf32, #tpu.memory_space<vmem>>) attributes {dimension_semantics = [#tpu.dimension_semantics<parallel>, #tpu.dimension_semantics<parallel>], iteration_bounds = array<i64: 2, 1>, scalar_prefetch = 0 : i64, scratch_operands = 0 : i64, tpu.core_type = #tpu.core_type<tc>, window_params = [{transform_indices = @transform_0, window_bounds = array<i64: 152, 128>}, {pipeline_mode = #tpu.pipeline_mode<synchronous>, transform_indices = @transform_1, window_bounds = array<i64: 3, 128>}, {pipeline_mode = #tpu.pipeline_mode<synchronous>, transform_indices = @transform_2, window_bounds = array<i64: 128, 128>}, {transform_indices = @transform_3, window_bounds = array<i64: 152, 128>}]} {
    %c0 = arith.constant 0 : index
    %c0_0 = arith.constant 0 : index
    %0 = vector.load %arg2[%c0, %c0_0] : memref<152x128xf32, #tpu.memory_space<vmem>>, vector<152x128xf32>
    %c0_1 = arith.constant 0 : index
    %c0_2 = arith.constant 0 : index
    %1 = vector.load %arg3[%c0_1, %c0_2] : memref<3x128xf32, #tpu.memory_space<vmem>>, vector<3x128xf32>
    %cst = arith.constant dense<0.000000e+00> : vector<152xf32>
    %2 = vector.multi_reduction <add>, %0, %cst [1] : vector<152x128xf32> to vector<152xf32>
    %3 = vector.shape_cast %2 : vector<152xf32> to vector<152x1xf32>
    %cst_3 = arith.constant 1.280000e+02 : f32
    %4 = vector.broadcast %cst_3 : f32 to vector<152x1xf32>
    %5 = arith.divf %3, %4 : vector<152x1xf32>
    %6 = vector.broadcast %5 : vector<152x1xf32> to vector<152x128xf32>
    %7 = arith.subf %0, %6 : vector<152x128xf32>
    %8 = arith.mulf %7, %7 : vector<152x128xf32>
    %cst_4 = arith.constant dense<0.000000e+00> : vector<152xf32>
    %9 = vector.multi_reduction <add>, %8, %cst_4 [1] : vector<152x128xf32> to vector<152xf32>
    %10 = vector.shape_cast %9 : vector<152xf32> to vector<152x1xf32>
    %cst_5 = arith.constant 1.280000e+02 : f32
    %11 = vector.broadcast %cst_5 : f32 to vector<152x1xf32>
    %12 = arith.divf %10, %11 : vector<152x1xf32>
    %cst_6 = arith.constant 9.99999974E-6 : f32
    %13 = vector.broadcast %cst_6 : f32 to vector<152x1xf32>
    %14 = arith.addf %12, %13 : vector<152x1xf32>
    %15 = math.rsqrt %14 : vector<152x1xf32>
    %16 = vector.broadcast %15 : vector<152x1xf32> to vector<152x128xf32>
    %17 = arith.mulf %7, %16 : vector<152x128xf32>
    %18 = vector.extract_strided_slice %1 {offsets = [0, 0], sizes = [1, 128], strides = [1, 1]} : vector<3x128xf32> to vector<1x128xf32>
    %19 = vector.broadcast %18 : vector<1x128xf32> to vector<152x128xf32>
    %20 = arith.mulf %17, %19 : vector<152x128xf32>
    %21 = vector.extract_strided_slice %1 {offsets = [1, 0], sizes = [1, 128], strides = [1, 1]} : vector<3x128xf32> to vector<1x128xf32>
    %22 = vector.broadcast %21 : vector<1x128xf32> to vector<152x128xf32>
    %23 = arith.addf %20, %22 : vector<152x128xf32>
    %cst_7 = arith.constant 0.000000e+00 : f32
    %24 = vector.broadcast %cst_7 : f32 to vector<152x128xf32>
    %25 = arith.maximumf %23, %24 : vector<152x128xf32>
    %26 = arith.truncf %25 : vector<152x128xf32> to vector<152x128xbf16>
    %c0_8 = arith.constant 0 : index
    %c0_9 = arith.constant 0 : index
    %27 = vector.load %arg4[%c0_8, %c0_9] : memref<128x128xbf16, #tpu.memory_space<vmem>>, vector<128x128xbf16>
    %cst_10 = arith.constant dense<0.000000e+00> : vector<152x128xf32>
    %28 = tpu.matmul %26, %27, %cst_10 {dimension_numbers = #tpu.dot_dimension_numbers<[1], [0], [0], [1], [0, 0, 1, 1], [], []>} : vector<152x128xbf16>, vector<128x128xbf16>, vector<152x128xf32> -> vector<152x128xf32>
    %29 = vector.extract_strided_slice %1 {offsets = [2, 0], sizes = [1, 128], strides = [1, 1]} : vector<3x128xf32> to vector<1x128xf32>
    %30 = vector.broadcast %29 : vector<1x128xf32> to vector<152x128xf32>
    %31 = arith.addf %28, %30 : vector<152x128xf32>
    %32 = arith.addf %31, %0 : vector<152x128xf32>
    %c0_11 = arith.constant 0 : index
    %c0_12 = arith.constant 0 : index
    %33 = vector.load %arg5[%c0_11, %c0_12] : memref<152x128xf32, #tpu.memory_space<vmem>>, vector<152x128xf32>
    tpu.vector_store %arg5[%c0_11, %c0_12], %32 {strides = array<i32>} : memref<152x128xf32, #tpu.memory_space<vmem>>, vector<152x128xf32>,
    return
  }
  func.func @transform_0(%arg0: i32, %arg1: i32) -> (i32, i32) {
    %c0_i32 = arith.constant 0 : i32
    %c0_i32_0 = arith.constant 0 : i32
    return %arg0, %c0_i32 : i32, i32
  }
  func.func @transform_1(%arg0: i32, %arg1: i32) -> (i32, i32) {
    %c0_i32 = arith.constant 0 : i32
    %c0_i32_0 = arith.constant 0 : i32
    %c0_i32_1 = arith.constant 0 : i32
    return %c0_i32, %c0_i32_0 : i32, i32
  }
  func.func @transform_2(%arg0: i32, %arg1: i32) -> (i32, i32) {
    %c0_i32 = arith.constant 0 : i32
    %c0_i32_0 = arith.constant 0 : i32
    %c0_i32_1 = arith.constant 0 : i32
    return %c0_i32, %c0_i32_0 : i32, i32
  }
  func.func @transform_3(%arg0: i32, %arg1: i32) -> (i32, i32) {
    %c0_i32 = arith.constant 0 : i32
    return %arg0, %arg1 : i32, i32
  }
}

module attributes {stable_mosaic.version = 11 : i64} {
  func.func @_ada_gnn_kernel(%arg0: i32, %arg1: i32, %arg2: memref<152x128xf32, #tpu.memory_space<vmem>>, %arg3: memref<3x128xf32, #tpu.memory_space<vmem>>, %arg4: memref<128x128xbf16, #tpu.memory_space<vmem>>, %arg5: memref<152x128xf32, #tpu.memory_space<vmem>>) attributes {dimension_semantics = [#tpu.dimension_semantics<parallel>, #tpu.dimension_semantics<parallel>], iteration_bounds = array<i64: 2, 1>, scalar_prefetch = 0 : i64, scratch_operands = 0 : i64, tpu.core_type = #tpu.core_type<tc>, window_params = [{transform_indices = @transform_0, window_bounds = array<i64: 152, 128>}, {pipeline_mode = #tpu.pipeline_mode<synchronous>, transform_indices = @transform_1, window_bounds = array<i64: 3, 128>}, {pipeline_mode = #tpu.pipeline_mode<synchronous>, transform_indices = @transform_2, window_bounds = array<i64: 128, 128>}, {transform_indices = @transform_3, window_bounds = array<i64: 152, 128>}]} {
    %c0 = arith.constant 0 : index
    %c0_0 = arith.constant 0 : index
    %0 = vector.load %arg2[%c0, %c0_0] : memref<152x128xf32, #tpu.memory_space<vmem>>, vector<152x128xf32>
    %c0_1 = arith.constant 0 : index
    %c0_2 = arith.constant 0 : index
    %1 = vector.load %arg3[%c0_1, %c0_2] : memref<3x128xf32, #tpu.memory_space<vmem>>, vector<3x128xf32>
    %cst = arith.constant dense<0.000000e+00> : vector<152xf32>
    %2 = vector.multi_reduction <add>, %0, %cst [1] : vector<152x128xf32> to vector<152xf32>
    %3 = vector.shape_cast %2 : vector<152xf32> to vector<152x1xf32>
    %cst_3 = arith.constant 1.280000e+02 : f32
    %4 = vector.broadcast %cst_3 : f32 to vector<152x1xf32>
    %5 = arith.divf %3, %4 : vector<152x1xf32>
    %6 = vector.broadcast %5 : vector<152x1xf32> to vector<152x128xf32>
    %7 = arith.subf %0, %6 : vector<152x128xf32>
    %8 = arith.mulf %7, %7 : vector<152x128xf32>
    %cst_4 = arith.constant dense<0.000000e+00> : vector<152xf32>
    %9 = vector.multi_reduction <add>, %8, %cst_4 [1] : vector<152x128xf32> to vector<152xf32>
    %10 = vector.shape_cast %9 : vector<152xf32> to vector<152x1xf32>
    %cst_5 = arith.constant 1.280000e+02 : f32
    %11 = vector.broadcast %cst_5 : f32 to vector<152x1xf32>
    %12 = arith.divf %10, %11 : vector<152x1xf32>
    %cst_6 = arith.constant 9.99999974E-6 : f32
    %13 = vector.broadcast %cst_6 : f32 to vector<152x1xf32>
    %14 = arith.addf %12, %13 : vector<152x1xf32>
    %15 = math.rsqrt %14 : vector<152x1xf32>
    %16 = vector.broadcast %15 : vector<152x1xf32> to vector<152x128xf32>
    %17 = arith.mulf %7, %16 : vector<152x128xf32>
    %18 = vector.extract_strided_slice %1 {offsets = [0, 0], sizes = [1, 128], strides = [1, 1]} : vector<3x128xf32> to vector<1x128xf32>
    %19 = vector.broadcast %18 : vector<1x128xf32> to vector<152x128xf32>
    %20 = arith.mulf %17, %19 : vector<152x128xf32>
    %21 = vector.extract_strided_slice %1 {offsets = [1, 0], sizes = [1, 128], strides = [1, 1]} : vector<3x128xf32> to vector<1x128xf32>
    %22 = vector.broadcast %21 : vector<1x128xf32> to vector<152x128xf32>
    %23 = arith.addf %20, %22 : vector<152x128xf32>
    %cst_7 = arith.constant 0.000000e+00 : f32
    %24 = vector.broadcast %cst_7 : f32 to vector<152x128xf32>
    %25 = arith.maximumf %23, %24 : vector<152x128xf32>
    %26 = arith.truncf %25 : vector<152x128xf32> to vector<152x128xbf16>
    %c0_8 = arith.constant 0 : index
    %c0_9 = arith.constant 0 : index
    %27 = vector.load %arg4[%c0_8, %c0_9] : memref<128x128xbf16, #tpu.memory_space<vmem>>, vector<128x128xbf16>
    %cst_10 = arith.constant dense<0.000000e+00> : vector<152x128xf32>
    %28 = tpu.matmul %26, %27, %cst_10 {dimension_numbers = #tpu.dot_dimension_numbers<[1], [0], [0], [1], [0, 0, 1, 1], [], []>} : vector<152x128xbf16>, vector<128x128xbf16>, vector<152x128xf32> -> vector<152x128xf32>
    %29 = vector.extract_strided_slice %1 {offsets = [2, 0], sizes = [1, 128], strides = [1, 1]} : vector<3x128xf32> to vector<1x128xf32>
    %30 = vector.broadcast %29 : vector<1x128xf32> to vector<152x128xf32>
    %31 = arith.addf %28, %30 : vector<152x128xf32>
    %32 = arith.addf %31, %0 : vector<152x128xf32>
    %c0_11 = arith.constant 0 : index
    %c0_12 = arith.constant 0 : index
    %33 = vector.load %arg5[%c0_11, %c0_12] : memref<152x128xf32, #tpu.memory_space<vmem>>, vector<152x128xf32>
    tpu.vector_store %arg5[%c0_11, %c0_12], %32 {strides = array<i32>} : memref<152x128xf32, #tpu.memory_space<vmem>>, vector<152x128xf32>,
    return
  }
  func.func @transform_0(%arg0: i32, %arg1: i32) -> (i32, i32) {
    %c0_i32 = arith.constant 0 : i32
    %c0_i32_0 = arith.constant 0 : i32
    return %arg0, %c0_i32 : i32, i32
  }
  func.func @transform_1(%arg0: i32, %arg1: i32) -> (i32, i32) {
    %c0_i32 = arith.constant 0 : i32
    %c0_i32_0 = arith.constant 0 : i32
    %c0_i32_1 = arith.constant 0 : i32
    return %c0_i32, %c0_i32_0 : i32, i32
  }
  func.func @transform_2(%arg0: i32, %arg1: i32) -> (i32, i32) {
    %c0_i32 = arith.constant 0 : i32
    %c0_i32_0 = arith.constant 0 : i32
    %c0_i32_1 = arith.constant 0 : i32
    return %c0_i32, %c0_i32_0 : i32, i32
  }
  func.func @transform_3(%arg0: i32, %arg1: i32) -> (i32, i32) {
    %c0_i32 = arith.constant 0 : i32
    return %arg0, %arg1 : i32, i32
  }
}

</mosaic_0001>

<llo_original>
// kernel: tpu_custom_call.1
$region0: #{tpu_custom_call.1}
  #allocation0 [shape = 'u32[]', space=smem, size = 0x4, offset = 0x4, fixed_abs, tag = 'smem constant byte address 0x4 - core index']
  #allocation1 [shape = 'u32[72,128]{1,0:T(1,128)}', space=vmem, size = 0x9000, scoped, tag = 'internal scratch']
  %s0 = inlined_call_operand.hbm [shape: f32[300,128], index: 0, kind: input, shape index: {}]
  %s1 = inlined_call_operand.hbm [shape: f32[3,128], index: 1, kind: input, shape index: {}]
  %s2 = inlined_call_operand.hbm [shape: bf16[128,128], index: 2, kind: input, shape index: {}]
  %s3 = inlined_call_operand.hbm [shape: f32[300,128], index: 3, kind: output, shape index: {}]
  %s4 = sld [smem:[#allocation0]]
  $region57: #{tpu_custom_call.1} parent=0
    _
  %s6 = ssub.s32 1, %s4
  %s7 = scalar_select 0, %s6, %s4
  $region1: #{tpu_custom_call.1} parent=0
    #allocation2 [shape = 'u8[155648]{0}', space=vmem, size = 0x26000, scoped, tag = 'input window, operand 0']
    #allocation3 [shape = 's32[2]{0}', space=sflag, size = 0x8, scoped, tag = 'scoped memory for tpu_custom_call.1']
    #allocation4 [shape = 's32[2]{0}', space=sflag, size = 0x8, scoped, tag = 'scoped memory for tpu_custom_call.1']
    #allocation5 [shape = 'u8[2048]{0}', space=vmem, size = 0x800, scoped, tag = 'input window, operand 1, single buffered']
    #allocation6 [shape = 's32[1]{0}', space=sflag, size = 0x4, scoped, tag = 'scoped memory for tpu_custom_call.1']
    #allocation7 [shape = 'u8[32768]{0}', space=vmem, size = 0x8000, scoped, tag = 'input window, operand 2, single buffered']
    #allocation8 [shape = 'u8[155648]{0}', space=vmem, size = 0x26000, scoped, tag = 'output window, operand 0']
    %8 = vsyncpa [#allocation3], 0
    %s9 = scalar_lea.sflag [#allocation3], 1
    %10 = vsyncpa %s9, 0
    %11 = vsyncpa [#allocation6], 0
    %12 = vsyncpa [#allocation4], 0
    %s13 = scalar_lea.sflag [#allocation4], 1
    %14 = vsyncpa %s13, 0
    loop: start=0, step=1, limit=4
    $region2: #{tpu_custom_call.1} parent=1 // loop_pre_header
      _
    $region3: #{tpu_custom_call.1} parent=1 // loop_header
      %s16 = sphi 0, %s20
      %p17 = scmp.ge.s32.totalorder %s16, 4
      %s23 = sphi 0, %s35
      %s24 = sphi 0, %s31
      %s25 = sphi 0, %s23
      %s26 = sphi 0, %s24
      %s27 = sphi 0, %s25
      %s28 = sphi 0, %s26
      %s38 = sphi 0, %s40
      %s41 = sphi 0, %s38
      %s42 = sphi 0, %s41
      %s58 = sphi 0, %s42
      %s62 = sphi 0, %s62
      %s64 = sphi 0, %s62
      %s65 = sphi 0, %s64
      %s79 = sphi 0, %s65
      %s83 = sphi 0, %s83
      %s85 = sphi 0, %s83
      %s86 = sphi 0, %s85
      %s100 = sphi 0, %s86
      %s108 = sphi 0, %s110
      %s111 = sphi 0, %s108
      %s112 = sphi 0, %s111
      %s128 = sphi 0, %s112
    $region4: #{tpu_custom_call.1} parent=1 // loop_header_branch
      %19 = sbr.rel (%p17) target = $region8
    $region5: #{tpu_custom_call.1} parent=1 // loop_body
      %s21 = ssub.s32 %s16, 1
      %s22 = ssub.s32 %s16, 2
      %s29 = sadd.s32 1, %s24
      %p30 = scmp.ge.s32.totalorder %s29, 1
      %s31 = scalar_select %p30, 0, %s29
      %s32 = sadd.s32 1, %s23
      %s33 = scalar_select %p30, %s32, %s23
      %p34 = scmp.ge.s32.totalorder %s33, 2
      %s35 = scalar_select %p34, 0, %s33
      %s36 = ssub.s32 %s23, %s35
      %p37 = scmp.eq.s32.totalorder %s36, 0
      %s39 = sadd.s32 %s38, 1
      %s40 = scalar_select %p37, %s38, %s39
      %p43 = pneg %p37
      %p44 = scmp.eq.s32.totalorder %s16, 1
      %p45 = por %p43, %p44
      %p46 = scmp.ne.s32.totalorder %s38, %s41
      %p47 = scmp.eq.s32.totalorder %s16, 0
      %p48 = por %p46, %p47
      %p49 = scmp.ne.s32.totalorder %s38, %s41
      %p50 = scmp.eq.s32.totalorder %s21, 1
      %p51 = por %p49, %p50
      %p52 = scmp.ne.s32.totalorder %s41, %s42
      %p53 = scmp.eq.s32.totalorder %s21, 0
      %p54 = por %p52, %p53
      %p55 = scmp.ne.s32.totalorder %s41, %s42
      %p56 = scmp.eq.s32.totalorder %s22, 1
      %p57 = por %p55, %p56
      %p59 = scmp.ne.s32.totalorder %s42, %s58
      %p60 = scmp.eq.s32.totalorder %s22, 0
      %p61 = por %p59, %p60
      %s63 = sadd.s32 %s62, 1
      %p66 = scmp.eq.s32.totalorder %s16, 1
      %p67 = scmp.ne.s32.totalorder %s62, %s64
      %p68 = scmp.eq.s32.totalorder %s16, 0
      %p69 = por %p67, %p68
      %p70 = scmp.ne.s32.totalorder %s62, %s64
      %p71 = scmp.eq.s32.totalorder %s21, 1
      %p72 = por %p70, %p71
      %p73 = scmp.ne.s32.totalorder %s64, %s65
      %p74 = scmp.eq.s32.totalorder %s21, 0
      %p75 = por %p73, %p74
      %p76 = scmp.ne.s32.totalorder %s64, %s65
      %p77 = scmp.eq.s32.totalorder %s22, 1
      %p78 = por %p76, %p77
      %p80 = scmp.ne.s32.totalorder %s65, %s79
      %p81 = scmp.eq.s32.totalorder %s22, 0
      %p82 = por %p80, %p81
      %s84 = sadd.s32 %s83, 1
      %p87 = scmp.eq.s32.totalorder %s16, 1
      %p88 = scmp.ne.s32.totalorder %s83, %s85
      %p89 = scmp.eq.s32.totalorder %s16, 0
      %p90 = por %p88, %p89
      %p91 = scmp.ne.s32.totalorder %s83, %s85
      %p92 = scmp.eq.s32.totalorder %s21, 1
      %p93 = por %p91, %p92
      %p94 = scmp.ne.s32.totalorder %s85, %s86
      %p95 = scmp.eq.s32.totalorder %s21, 0
      %p96 = por %p94, %p95
      %p97 = scmp.ne.s32.totalorder %s85, %s86
      %p98 = scmp.eq.s32.totalorder %s22, 1
      %p99 = por %p97, %p98
      %p101 = scmp.ne.s32.totalorder %s86, %s100
      %p102 = scmp.eq.s32.totalorder %s22, 0
      %p103 = por %p101, %p102
      %s104 = ssub.s32 %s23, %s35
      %s105 = ssub.s32 %s24, %s31
      %s106 = sor.u32 %s104, %s105
      %p107 = scmp.eq.s32.totalorder %s106, 0
      %s109 = sadd.s32 %s108, 1
      %s110 = scalar_select %p107, %s108, %s109
      %p113 = pneg %p107
      %p114 = scmp.eq.s32.totalorder %s16, 1
      %p115 = por %p113, %p114
      %p116 = scmp.ne.s32.totalorder %s108, %s111
      %p117 = scmp.eq.s32.totalorder %s16, 0
      %p118 = por %p116, %p117
      %p119 = scmp.ne.s32.totalorder %s108, %s111
      %p120 = scmp.eq.s32.totalorder %s21, 1
      %p121 = por %p119, %p120
      %p122 = scmp.ne.s32.totalorder %s111, %s112
      %p123 = scmp.eq.s32.totalorder %s21, 0
      %p124 = por %p122, %p123
      %p125 = scmp.ne.s32.totalorder %s111, %s112
      %p126 = scmp.eq.s32.totalorder %s22, 1
      %p127 = por %p125, %p126
      %p129 = scmp.ne.s32.totalorder %s112, %s128
      %p130 = scmp.eq.s32.totalorder %s22, 0
      %p131 = por %p129, %p130
      %p132 = scmp.le.s32.totalorder 1, %s16
      %p133 = scmp.lt.s32.totalorder %s16, 3
      %p134 = pnand %p132, %p133
      %p135 = pneg %p134
      // Predicated region
      $region9: #{tpu_custom_call.1} parent=5 // pred_check
        _
      $region10: #{tpu_custom_call.1} parent=5 // pred_check_branch
        %137 = sbr.rel (%p134) target = $region12
      $region11: #{tpu_custom_call.1} parent=5 // pred_region
        %s138 = ssub.s32 %s16, 1
        // Predicated region
        $region13: #{tpu_custom_call.1} parent=11 // pred_check
          %p139 = pneg %p75
        $region14: #{tpu_custom_call.1} parent=11 // pred_check_branch
          %141 = sbr.rel (%p139) target = $region16
        $region15: #{tpu_custom_call.1} parent=11 // pred_region
          %143 = vsyncadd [#allocation6], 0
          %s145 = sshll.u32 %s1, 4
          %s146 = int_to_ptr.hbm [resolvable:$true] %s145
          %s147 = sshll.u32 [#allocation5], 4
          %s148 = int_to_ptr.vmem [resolvable:$true] %s147
          %150 = dma.hbm_to_vmem [thread:$0]  %s146, 64, %s148, [#allocation6]
        $region16: #{tpu_custom_call.1} parent=11 // pred_fallthru
          _
        // Predicated region
        $region17: #{tpu_custom_call.1} parent=11 // pred_check
          %p151 = pneg %p96
        $region18: #{tpu_custom_call.1} parent=11 // pred_check_branch
          %153 = sbr.rel (%p151) target = $region20
        $region19: #{tpu_custom_call.1} parent=11 // pred_region
          %155 = vsyncadd [#allocation6], 0
          %s156 = sshll.u32 %s2, 4
          %s157 = int_to_ptr.hbm [resolvable:$true] %s156
          %s158 = sshll.u32 [#allocation7], 4
          %s159 = int_to_ptr.vmem [resolvable:$true] %s158
          %164 = dma.hbm_to_vmem [thread:$0]  %s157, 1024, %s159, [#allocation6], 64, 64, 4
        $region20: #{tpu_custom_call.1} parent=11 // pred_fallthru
          _
      $region12: #{tpu_custom_call.1} parent=5 // pred_fallthru
        _
      %p165 = scmp.lt.s32.totalorder %s16, 2
      // Predicated region
      $region21: #{tpu_custom_call.1} parent=5 // pred_check
        %p166 = pneg %p165
      $region22: #{tpu_custom_call.1} parent=5 // pred_check_branch
        %168 = sbr.rel (%p166) target = $region24
      $region23: #{tpu_custom_call.1} parent=5 // pred_region
        // Predicated region
        $region25: #{tpu_custom_call.1} parent=23 // pred_check
          %p169 = pneg %p48
        $region26: #{tpu_custom_call.1} parent=23 // pred_check_branch
          %171 = sbr.rel (%p169) target = $region28
        $region27: #{tpu_custom_call.1} parent=23 // pred_region
          %s172 = sand.u32 %s38, 1
          %s173 = scalar_lea.sflag [#allocation3], %s172
          %s174 = sand.u32 %s38, 1
          %s175 = smul.addr %s174, 152
          %s176 = scalar_lea.vmem [#allocation2], %s175
          %s177 = smul.u32 19, %s23
          %179 = vsyncadd %s173, 0
          %s180 = smul.addr %s177, 8
          %s181 = scalar_lea.hbm %s0, %s180
          %s182 = sshll.u32 %s181, 4
          %s183 = int_to_ptr.hbm [resolvable:$true] %s182
          %s184 = sshll.u32 %s176, 4
          %s185 = int_to_ptr.vmem [resolvable:$true] %s184
          %190 = dma.hbm_to_vmem [thread:$0]  %s183, 2432, %s185, %s173, 128, 128, 8
        $region28: #{tpu_custom_call.1} parent=23 // pred_fallthru
          _
      $region24: #{tpu_custom_call.1} parent=5 // pred_fallthru
        _
      %p191 = scmp.le.s32.totalorder 1, %s16
      %p192 = scmp.lt.s32.totalorder %s16, 3
      %p193 = pnand %p191, %p192
      %p194 = pneg %p193
      // Predicated region
      $region29: #{tpu_custom_call.1} parent=5 // pred_check
        _
      $region30: #{tpu_custom_call.1} parent=5 // pred_check_branch
        %196 = sbr.rel (%p193) target = $region32
      $region31: #{tpu_custom_call.1} parent=5 // pred_region
        %s197 = ssub.s32 %s16, 1
        %s198 = sand.u32 %s41, 1
        %s199 = scalar_lea.sflag [#allocation3], %s198
        %s200 = sand.u32 %s41, 1
        %s201 = smul.addr %s200, 152
        %s202 = scalar_lea.vmem [#allocation2], %s201
        // Predicated region
        $region33: #{tpu_custom_call.1} parent=31 // pred_check
          %p203 = pneg %p54
        $region34: #{tpu_custom_call.1} parent=31 // pred_check_branch
          %205 = sbr.rel (%p203) target = $region36
        $region35: #{tpu_custom_call.1} parent=31 // pred_region
          %207 = dma.done %s199, 2432
        $region36: #{tpu_custom_call.1} parent=31 // pred_fallthru
          _
        // Predicated region
        $region37: #{tpu_custom_call.1} parent=31 // pred_check
          %p208 = pneg %p75
        $region38: #{tpu_custom_call.1} parent=31 // pred_check_branch
          %210 = sbr.rel (%p208) target = $region40
        $region39: #{tpu_custom_call.1} parent=31 // pred_region
          %212 = dma.done [#allocation6], 64
        $region40: #{tpu_custom_call.1} parent=31 // pred_fallthru
          _
        // Predicated region
        $region41: #{tpu_custom_call.1} parent=31 // pred_check
          %p213 = pneg %p96
        $region42: #{tpu_custom_call.1} parent=31 // pred_check_branch
          %215 = sbr.rel (%p213) target = $region44
        $region43: #{tpu_custom_call.1} parent=31 // pred_region
          %217 = dma.done [#allocation6], 1024
        $region44: #{tpu_custom_call.1} parent=31 // pred_fallthru
          _
        %s218 = sand.u32 %s41, 1
        %s219 = scalar_lea.sflag [#allocation3], %s218
        %s220 = sand.u32 %s41, 1
        %s221 = smul.addr %s220, 152
        %s222 = scalar_lea.vmem [#allocation2], %s221
        %p223 = pneg %p54
        %p224 = pneg %p51
        %p225 = pneg %p75
        %p226 = pneg %p72
        %p227 = pneg %p96
        %p228 = pneg %p93
        %p229 = pneg %p124
        %p230 = pneg %p121
        %s231 = sand.u32 %s111, 1
        %s232 = scalar_lea.sflag [#allocation4], %s231
        %s233 = sand.u32 %s111, 1
        %s234 = smul.addr %s233, 152
        %s235 = scalar_lea.vmem [#allocation8], %s234
        %s236 = smul.u32 19, %s25
        %s237 = smul.u32 19, %s25
        %v238 = vld [vmem:[%s202] sm:$0xff]
        %v239 = vld [vmem:[%s202 + $0x8] sm:$0xff]
        %v240 = vld [vmem:[%s202 + $0x10] sm:$0xff]
        %v241 = vld [vmem:[%s202 + $0x18] sm:$0xff]
        %v242 = vld [vmem:[%s202 + $0x20] sm:$0xff]
        %v243 = vld [vmem:[%s202 + $0x28] sm:$0xff]
        %v244 = vld [vmem:[%s202 + $0x30] sm:$0xff]
        %v245 = vld [vmem:[%s202 + $0x38] sm:$0xff]
        %v246 = vld [vmem:[%s202 + $0x40] sm:$0xff]
        %v247 = vld [vmem:[%s202 + $0x48] sm:$0xff]
        %v248 = vld [vmem:[%s202 + $0x50] sm:$0xff]
        %v249 = vld [vmem:[%s202 + $0x58] sm:$0xff]
        %v250 = vld [vmem:[%s202 + $0x60] sm:$0xff]
        %v251 = vld [vmem:[%s202 + $0x68] sm:$0xff]
        %v252 = vld [vmem:[%s202 + $0x70] sm:$0xff]
        %v253 = vld [vmem:[%s202 + $0x78] sm:$0xff]
        %v254 = vld [vmem:[%s202 + $0x80] sm:$0xff]
        %v255 = vld [vmem:[%s202 + $0x88] sm:$0xff]
        %v256 = vld [vmem:[%s202 + $0x90] sm:$0xff]
        %v257 = vld [vmem:[#allocation5] sm:$0x7]
        %258 = vadd.xlane.f32.xlu0 %v238
        %v259 = vpop.xlane.xlu0 %258
        %260 = vadd.xlane.f32.xlu0 %v239
        %v261 = vpop.xlane.xlu0 %260
        %262 = vadd.xlane.f32.xlu0 %v240
        %v263 = vpop.xlane.xlu0 %262
        %264 = vadd.xlane.f32.xlu0 %v241
        %v265 = vpop.xlane.xlu0 %264
        %266 = vadd.xlane.f32.xlu0 %v242
        %v267 = vpop.xlane.xlu0 %266
        %268 = vadd.xlane.f32.xlu0 %v243
        %v269 = vpop.xlane.xlu0 %268
        %270 = vadd.xlane.f32.xlu0 %v244
        %v271 = vpop.xlane.xlu0 %270
        %272 = vadd.xlane.f32.xlu0 %v245
        %v273 = vpop.xlane.xlu0 %272
        %274 = vadd.xlane.f32.xlu0 %v246
        %v275 = vpop.xlane.xlu0 %274
        %276 = vadd.xlane.f32.xlu0 %v247
        %v277 = vpop.xlane.xlu0 %276
        %278 = vadd.xlane.f32.xlu0 %v248
        %v279 = vpop.xlane.xlu0 %278
        %280 = vadd.xlane.f32.xlu0 %v249
        %v281 = vpop.xlane.xlu0 %280
        %282 = vadd.xlane.f32.xlu0 %v250
        %v283 = vpop.xlane.xlu0 %282
        %284 = vadd.xlane.f32.xlu0 %v251
        %v285 = vpop.xlane.xlu0 %284
        %286 = vadd.xlane.f32.xlu0 %v252
        %v287 = vpop.xlane.xlu0 %286
        %288 = vadd.xlane.f32.xlu0 %v253
        %v289 = vpop.xlane.xlu0 %288
        %290 = vadd.xlane.f32.xlu0 %v254
        %v291 = vpop.xlane.xlu0 %290
        %292 = vadd.xlane.f32.xlu0 %v255
        %v293 = vpop.xlane.xlu0 %292
        %294 = vadd.xlane.f32.xlu0 %v256
        %v295 = vpop.xlane.xlu0 %294
        %v296 = vrcp.pop 128.0
        %v297 = vmul.f32 128.0, %v296
        %v298 = vsub.f32 1.0, %v297
        %v299 = vmul.f32 %v296, %v298
        %v300 = vadd.f32 %v296, %v299
        %vm301 = vweird.f32 %v296
        %v302 = vsel %vm301, %v296, %v300
        %v303 = vmul.f32 %v259, %v302
        %v304 = vmul.f32 %v261, %v302
        %v305 = vmul.f32 %v263, %v302
        %v306 = vmul.f32 %v265, %v302
        %v307 = vmul.f32 %v267, %v302
        %v308 = vmul.f32 %v269, %v302
        %v309 = vmul.f32 %v271, %v302
        %v310 = vmul.f32 %v273, %v302
        %v311 = vmul.f32 %v275, %v302
        %v312 = vmul.f32 %v277, %v302
        %v313 = vmul.f32 %v279, %v302
        %v314 = vmul.f32 %v281, %v302
        %v315 = vmul.f32 %v283, %v302
        %v316 = vmul.f32 %v285, %v302
        %v317 = vmul.f32 %v287, %v302
        %v318 = vmul.f32 %v289, %v302
        %v319 = vmul.f32 %v291, %v302
        %v320 = vmul.f32 %v293, %v302
        %v321 = vmul.f32 %v295, %v302
        %v322 = vsub.f32 %v238, %v303
        %v323 = vsub.f32 %v239, %v304
        %v324 = vsub.f32 %v240, %v305
        %v325 = vsub.f32 %v241, %v306
        %v326 = vsub.f32 %v242, %v307
        %v327 = vsub.f32 %v243, %v308
        %v328 = vsub.f32 %v244, %v309
        %v329 = vsub.f32 %v245, %v310
        %v330 = vsub.f32 %v246, %v311
        %v331 = vsub.f32 %v247, %v312
        %v332 = vsub.f32 %v248, %v313
        %v333 = vsub.f32 %v249, %v314
        %v334 = vsub.f32 %v250, %v315
        %v335 = vsub.f32 %v251, %v316
        %v336 = vsub.f32 %v252, %v317
        %v337 = vsub.f32 %v253, %v318
        %v338 = vsub.f32 %v254, %v319
        %v339 = vsub.f32 %v255, %v320
        %v340 = vsub.f32 %v256, %v321
        %v341 = vmul.f32 %v322, %v322
        %v342 = vmul.f32 %v323, %v323
        %v343 = vmul.f32 %v324, %v324
        %v344 = vmul.f32 %v325, %v325
        %v345 = vmul.f32 %v326, %v326
        %v346 = vmul.f32 %v327, %v327
        %v347 = vmul.f32 %v328, %v328
        %v348 = vmul.f32 %v329, %v329
        %v349 = vmul.f32 %v330, %v330
        %v350 = vmul.f32 %v331, %v331
        %v351 = vmul.f32 %v332, %v332
        %v352 = vmul.f32 %v333, %v333
        %v353 = vmul.f32 %v334, %v334
        %v354 = vmul.f32 %v335, %v335
        %v355 = vmul.f32 %v336, %v336
        %v356 = vmul.f32 %v337, %v337
        %v357 = vmul.f32 %v338, %v338
        %v358 = vmul.f32 %v339, %v339
        %v359 = vmul.f32 %v340, %v340
        %360 = vadd.xlane.f32.xlu0 %v341
        %v361 = vpop.xlane.xlu0 %360
        %362 = vadd.xlane.f32.xlu0 %v342
        %v363 = vpop.xlane.xlu0 %362
        %364 = vadd.xlane.f32.xlu0 %v343
        %v365 = vpop.xlane.xlu0 %364
        %366 = vadd.xlane.f32.xlu0 %v344
        %v367 = vpop.xlane.xlu0 %366
        %368 = vadd.xlane.f32.xlu0 %v345
        %v369 = vpop.xlane.xlu0 %368
        %370 = vadd.xlane.f32.xlu0 %v346
        %v371 = vpop.xlane.xlu0 %370
        %372 = vadd.xlane.f32.xlu0 %v347
        %v373 = vpop.xlane.xlu0 %372
        %374 = vadd.xlane.f32.xlu0 %v348
        %v375 = vpop.xlane.xlu0 %374
        %376 = vadd.xlane.f32.xlu0 %v349
        %v377 = vpop.xlane.xlu0 %376
        %378 = vadd.xlane.f32.xlu0 %v350
        %v379 = vpop.xlane.xlu0 %378
        %380 = vadd.xlane.f32.xlu0 %v351
        %v381 = vpop.xlane.xlu0 %380
        %382 = vadd.xlane.f32.xlu0 %v352
        %v383 = vpop.xlane.xlu0 %382
        %384 = vadd.xlane.f32.xlu0 %v353
        %v385 = vpop.xlane.xlu0 %384
        %386 = vadd.xlane.f32.xlu0 %v354
        %v387 = vpop.xlane.xlu0 %386
        %388 = vadd.xlane.f32.xlu0 %v355
        %v389 = vpop.xlane.xlu0 %388
        %390 = vadd.xlane.f32.xlu0 %v356
        %v391 = vpop.xlane.xlu0 %390
        %392 = vadd.xlane.f32.xlu0 %v357
        %v393 = vpop.xlane.xlu0 %392
        %394 = vadd.xlane.f32.xlu0 %v358
        %v395 = vpop.xlane.xlu0 %394
        %396 = vadd.xlane.f32.xlu0 %v359
        %v397 = vpop.xlane.xlu0 %396
        %v398 = vmul.f32 %v361, %v302
        %v399 = vmul.f32 %v363, %v302
        %v400 = vmul.f32 %v365, %v302
        %v401 = vmul.f32 %v367, %v302
        %v402 = vmul.f32 %v369, %v302
        %v403 = vmul.f32 %v371, %v302
        %v404 = vmul.f32 %v373, %v302
        %v405 = vmul.f32 %v375, %v302
        %v406 = vmul.f32 %v377, %v302
        %v407 = vmul.f32 %v379, %v302
        %v408 = vmul.f32 %v381, %v302
        %v409 = vmul.f32 %v383, %v302
        %v410 = vmul.f32 %v385, %v302
        %v411 = vmul.f32 %v387, %v302
        %v412 = vmul.f32 %v389, %v302
        %v413 = vmul.f32 %v391, %v302
        %v414 = vmul.f32 %v393, %v302
        %v415 = vmul.f32 %v395, %v302
        %v416 = vmul.f32 %v397, %v302
        %v417 = vadd.f32 %v398, 1e-05
        %v418 = vadd.f32 %v399, 1e-05
        %v419 = vadd.f32 %v400, 1e-05
        %v420 = vadd.f32 %v401, 1e-05
        %v421 = vadd.f32 %v402, 1e-05
        %v422 = vadd.f32 %v403, 1e-05
        %v423 = vadd.f32 %v404, 1e-05
        %v424 = vadd.f32 %v405, 1e-05
        %v425 = vadd.f32 %v406, 1e-05
        %v426 = vadd.f32 %v407, 1e-05
        %v427 = vadd.f32 %v408, 1e-05
        %v428 = vadd.f32 %v409, 1e-05
        %v429 = vadd.f32 %v410, 1e-05
        %v430 = vadd.f32 %v411, 1e-05
        %v431 = vadd.f32 %v412, 1e-05
        %v432 = vadd.f32 %v413, 1e-05
        %v433 = vadd.f32 %v414, 1e-05
        %v434 = vadd.f32 %v415, 1e-05
        %v435 = vadd.f32 %v416, 1e-05
        %v436 = vrsqrt.pop %v417
        %v437 = vmul.f32 %v436, %v417
        %v438 = vmul.f32 %v437, %v436
        %v439 = vmul.f32 0.5, %v438
        %v440 = vsub.f32 1.5, %v439
        %v441 = vmul.f32 %v436, %v440
        %vm442 = vweird.f32 %v417
        %vm443 = vweird.f32 %v436
        %vm444 = vmor %vm442, %vm443
        %v445 = vsel %vm444, %v436, %v441
        %v446 = vrsqrt.pop %v418
        %v447 = vmul.f32 %v446, %v418
        %v448 = vmul.f32 %v447, %v446
        %v449 = vmul.f32 0.5, %v448
        %v450 = vsub.f32 1.5, %v449
        %v451 = vmul.f32 %v446, %v450
        %vm452 = vweird.f32 %v418
        %vm453 = vweird.f32 %v446
        %vm454 = vmor %vm452, %vm453
        %v455 = vsel %vm454, %v446, %v451
        %v456 = vrsqrt.pop %v419
        %v457 = vmul.f32 %v456, %v419
        %v458 = vmul.f32 %v457, %v456
        %v459 = vmul.f32 0.5, %v458
        %v460 = vsub.f32 1.5, %v459
        %v461 = vmul.f32 %v456, %v460
        %vm462 = vweird.f32 %v419
        %vm463 = vweird.f32 %v456
        %vm464 = vmor %vm462, %vm463
        %v465 = vsel %vm464, %v456, %v461
        %v466 = vrsqrt.pop %v420
        %v467 = vmul.f32 %v466, %v420
        %v468 = vmul.f32 %v467, %v466
        %v469 = vmul.f32 0.5, %v468
        %v470 = vsub.f32 1.5, %v469
        %v471 = vmul.f32 %v466, %v470
        %vm472 = vweird.f32 %v420
        %vm473 = vweird.f32 %v466
        %vm474 = vmor %vm472, %vm473
        %v475 = vsel %vm474, %v466, %v471
        %v476 = vrsqrt.pop %v421
        %v477 = vmul.f32 %v476, %v421
        %v478 = vmul.f32 %v477, %v476
        %v479 = vmul.f32 0.5, %v478
        %v480 = vsub.f32 1.5, %v479
        %v481 = vmul.f32 %v476, %v480
        %vm482 = vweird.f32 %v421
        %vm483 = vweird.f32 %v476
        %vm484 = vmor %vm482, %vm483
        %v485 = vsel %vm484, %v476, %v481
        %v486 = vrsqrt.pop %v422
        %v487 = vmul.f32 %v486, %v422
        %v488 = vmul.f32 %v487, %v486
        %v489 = vmul.f32 0.5, %v488
        %v490 = vsub.f32 1.5, %v489
        %v491 = vmul.f32 %v486, %v490
        %vm492 = vweird.f32 %v422
        %vm493 = vweird.f32 %v486
        %vm494 = vmor %vm492, %vm493
        %v495 = vsel %vm494, %v486, %v491
        %v496 = vrsqrt.pop %v423
        %v497 = vmul.f32 %v496, %v423
        %v498 = vmul.f32 %v497, %v496
        %v499 = vmul.f32 0.5, %v498
        %v500 = vsub.f32 1.5, %v499
        %v501 = vmul.f32 %v496, %v500
        %vm502 = vweird.f32 %v423
        %vm503 = vweird.f32 %v496
        %vm504 = vmor %vm502, %vm503
        %v505 = vsel %vm504, %v496, %v501
        %v506 = vrsqrt.pop %v424
        %v507 = vmul.f32 %v506, %v424
        %v508 = vmul.f32 %v507, %v506
        %v509 = vmul.f32 0.5, %v508
        %v510 = vsub.f32 1.5, %v509
        %v511 = vmul.f32 %v506, %v510
        %vm512 = vweird.f32 %v424
        %vm513 = vweird.f32 %v506
        %vm514 = vmor %vm512, %vm513
        %v515 = vsel %vm514, %v506, %v511
        %v516 = vrsqrt.pop %v425
        %v517 = vmul.f32 %v516, %v425
        %v518 = vmul.f32 %v517, %v516
        %v519 = vmul.f32 0.5, %v518
        %v520 = vsub.f32 1.5, %v519
        %v521 = vmul.f32 %v516, %v520
        %vm522 = vweird.f32 %v425
        %vm523 = vweird.f32 %v516
        %vm524 = vmor %vm522, %vm523
        %v525 = vsel %vm524, %v516, %v521
        %v526 = vrsqrt.pop %v426
        %v527 = vmul.f32 %v526, %v426
        %v528 = vmul.f32 %v527, %v526
        %v529 = vmul.f32 0.5, %v528
        %v530 = vsub.f32 1.5, %v529
        %v531 = vmul.f32 %v526, %v530
        %vm532 = vweird.f32 %v426
        %vm533 = vweird.f32 %v526
        %vm534 = vmor %vm532, %vm533
        %v535 = vsel %vm534, %v526, %v531
        %v536 = vrsqrt.pop %v427
        %v537 = vmul.f32 %v536, %v427
        %v538 = vmul.f32 %v537, %v536
        %v539 = vmul.f32 0.5, %v538
        %v540 = vsub.f32 1.5, %v539
        %v541 = vmul.f32 %v536, %v540
        %vm542 = vweird.f32 %v427
        %vm543 = vweird.f32 %v536
        %vm544 = vmor %vm542, %vm543
        %v545 = vsel %vm544, %v536, %v541
        %v546 = vrsqrt.pop %v428
        %v547 = vmul.f32 %v546, %v428
        %v548 = vmul.f32 %v547, %v546
        %v549 = vmul.f32 0.5, %v548
        %v550 = vsub.f32 1.5, %v549
        %v551 = vmul.f32 %v546, %v550
        %vm552 = vweird.f32 %v428
        %vm553 = vweird.f32 %v546
        %vm554 = vmor %vm552, %vm553
        %v555 = vsel %vm554, %v546, %v551
        %v556 = vrsqrt.pop %v429
        %v557 = vmul.f32 %v556, %v429
        %v558 = vmul.f32 %v557, %v556
        %v559 = vmul.f32 0.5, %v558
        %v560 = vsub.f32 1.5, %v559
        %v561 = vmul.f32 %v556, %v560
        %vm562 = vweird.f32 %v429
        %vm563 = vweird.f32 %v556
        %vm564 = vmor %vm562, %vm563
        %v565 = vsel %vm564, %v556, %v561
        %v566 = vrsqrt.pop %v430
        %v567 = vmul.f32 %v566, %v430
        %v568 = vmul.f32 %v567, %v566
        %v569 = vmul.f32 0.5, %v568
        %v570 = vsub.f32 1.5, %v569
        %v571 = vmul.f32 %v566, %v570
        %vm572 = vweird.f32 %v430
        %vm573 = vweird.f32 %v566
        %vm574 = vmor %vm572, %vm573
        %v575 = vsel %vm574, %v566, %v571
        %v576 = vrsqrt.pop %v431
        %v577 = vmul.f32 %v576, %v431
        %v578 = vmul.f32 %v577, %v576
        %v579 = vmul.f32 0.5, %v578
        %v580 = vsub.f32 1.5, %v579
        %v581 = vmul.f32 %v576, %v580
        %vm582 = vweird.f32 %v431
        %vm583 = vweird.f32 %v576
        %vm584 = vmor %vm582, %vm583
        %v585 = vsel %vm584, %v576, %v581
        %v586 = vrsqrt.pop %v432
        %v587 = vmul.f32 %v586, %v432
        %v588 = vmul.f32 %v587, %v586
        %v589 = vmul.f32 0.5, %v588
        %v590 = vsub.f32 1.5, %v589
        %v591 = vmul.f32 %v586, %v590
        %vm592 = vweird.f32 %v432
        %vm593 = vweird.f32 %v586
        %vm594 = vmor %vm592, %vm593
        %v595 = vsel %vm594, %v586, %v591
        %v596 = vrsqrt.pop %v433
        %v597 = vmul.f32 %v596, %v433
        %v598 = vmul.f32 %v597, %v596
        %v599 = vmul.f32 0.5, %v598
        %v600 = vsub.f32 1.5, %v599
        %v601 = vmul.f32 %v596, %v600
        %vm602 = vweird.f32 %v433
        %vm603 = vweird.f32 %v596
        %vm604 = vmor %vm602, %vm603
        %v605 = vsel %vm604, %v596, %v601
        %v606 = vrsqrt.pop %v434
        %v607 = vmul.f32 %v606, %v434
        %v608 = vmul.f32 %v607, %v606
        %v609 = vmul.f32 0.5, %v608
        %v610 = vsub.f32 1.5, %v609
        %v611 = vmul.f32 %v606, %v610
        %vm612 = vweird.f32 %v434
        %vm613 = vweird.f32 %v606
        %vm614 = vmor %vm612, %vm613
        %v615 = vsel %vm614, %v606, %v611
        %v616 = vrsqrt.pop %v435
        %v617 = vmul.f32 %v616, %v435
        %v618 = vmul.f32 %v617, %v616
        %v619 = vmul.f32 0.5, %v618
        %v620 = vsub.f32 1.5, %v619
        %v621 = vmul.f32 %v616, %v620
        %vm622 = vweird.f32 %v435
        %vm623 = vweird.f32 %v616
        %vm624 = vmor %vm622, %vm623
        %v625 = vsel %vm624, %v616, %v621
        %v626 = vmul.f32 %v322, %v445
        %v627 = vmul.f32 %v323, %v455
        %v628 = vmul.f32 %v324, %v465
        %v629 = vmul.f32 %v325, %v475
        %v630 = vmul.f32 %v326, %v485
        %v631 = vmul.f32 %v327, %v495
        %v632 = vmul.f32 %v328, %v505
        %v633 = vmul.f32 %v329, %v515
        %v634 = vmul.f32 %v330, %v525
        %v635 = vmul.f32 %v331, %v535
        %v636 = vmul.f32 %v332, %v545
        %v637 = vmul.f32 %v333, %v555
        %v638 = vmul.f32 %v334, %v565
        %v639 = vmul.f32 %v335, %v575
        %v640 = vmul.f32 %v336, %v585
        %v641 = vmul.f32 %v337, %v595
        %v642 = vmul.f32 %v338, %v605
        %v643 = vmul.f32 %v339, %v615
        %v644 = vmul.f32 %v340, %v625
        %v645 = vperm.slane %v257, 0
        %v646 = vmul.f32 %v626, %v645
        %v647 = vmul.f32 %v627, %v645
        %v648 = vmul.f32 %v628, %v645
        %v649 = vmul.f32 %v629, %v645
        %v650 = vmul.f32 %v630, %v645
        %v651 = vmul.f32 %v631, %v645
        %v652 = vmul.f32 %v632, %v645
        %v653 = vmul.f32 %v633, %v645
        %v654 = vmul.f32 %v634, %v645
        %v655 = vmul.f32 %v635, %v645
        %v656 = vmul.f32 %v636, %v645
        %v657 = vmul.f32 %v637, %v645
        %v658 = vmul.f32 %v638, %v645
        %v659 = vmul.f32 %v639, %v645
        %v660 = vmul.f32 %v640, %v645
        %v661 = vmul.f32 %v641, %v645
        %v662 = vmul.f32 %v642, %v645
        %v663 = vmul.f32 %v643, %v645
        %v664 = vmul.f32 %v644, %v645
        %v665 = vperm.slane %v257, 1
        %v666 = vadd.f32 %v646, %v665
        %v667 = vadd.f32 %v647, %v665
        %v668 = vadd.f32 %v648, %v665
        %v669 = vadd.f32 %v649, %v665
        %v670 = vadd.f32 %v650, %v665
        %v671 = vadd.f32 %v651, %v665
        %v672 = vadd.f32 %v652, %v665
        %v673 = vadd.f32 %v653, %v665
        %v674 = vadd.f32 %v654, %v665
        %v675 = vadd.f32 %v655, %v665
        %v676 = vadd.f32 %v656, %v665
        %v677 = vadd.f32 %v657, %v665
        %v678 = vadd.f32 %v658, %v665
        %v679 = vadd.f32 %v659, %v665
        %v680 = vadd.f32 %v660, %v665
        %v681 = vadd.f32 %v661, %v665
        %v682 = vadd.f32 %v662, %v665
        %v683 = vadd.f32 %v663, %v665
        %v684 = vadd.f32 %v664, %v665
        %v685 = vmax.f32 %v666, 0.0
        %v686 = vmax.f32 %v667, 0.0
        %v687 = vmax.f32 %v668, 0.0
        %v688 = vmax.f32 %v669, 0.0
        %v689 = vmax.f32 %v670, 0.0
        %v690 = vmax.f32 %v671, 0.0
        %v691 = vmax.f32 %v672, 0.0
        %v692 = vmax.f32 %v673, 0.0
        %v693 = vmax.f32 %v674, 0.0
        %v694 = vmax.f32 %v675, 0.0
        %v695 = vmax.f32 %v676, 0.0
        %v696 = vmax.f32 %v677, 0.0
        %v697 = vmax.f32 %v678, 0.0
        %v698 = vmax.f32 %v679, 0.0
        %v699 = vmax.f32 %v680, 0.0
        %v700 = vmax.f32 %v681, 0.0
        %v701 = vmax.f32 %v682, 0.0
        %v702 = vmax.f32 %v683, 0.0
        %v703 = vmax.f32 %v684, 0.0
        %v704 = vpack.c.bf16 %v686, %v685
        %v705 = vpack.c.bf16 %v688, %v687
        %v706 = vpack.c.bf16 %v690, %v689
        %v707 = vpack.c.bf16 %v692, %v691
        %v708 = vpack.c.bf16 %v694, %v693
        %v709 = vpack.c.bf16 %v696, %v695
        %v710 = vpack.c.bf16 %v698, %v697
        %v711 = vpack.c.bf16 %v700, %v699
        %v712 = vpack.c.bf16 %v702, %v701
        %v713 = vpack.c.bf16 %v703, %v703
        %v714 = vld [vmem:[#allocation7] sm:$0xf]
        %v715 = vld [vmem:[#allocation7 + $0x4] sm:$0xf]
        %v716 = vld [vmem:[#allocation7 + $0x8] sm:$0xf]
        %v717 = vld [vmem:[#allocation7 + $0xc] sm:$0xf]
        %v718 = vld [vmem:[#allocation7 + $0x10] sm:$0xf]
        %v719 = vld [vmem:[#allocation7 + $0x14] sm:$0xf]
        %v720 = vld [vmem:[#allocation7 + $0x18] sm:$0xf]
        %v721 = vld [vmem:[#allocation7 + $0x1c] sm:$0xf]
        %v722 = vld [vmem:[#allocation7 + $0x20] sm:$0xf]
        %v723 = vld [vmem:[#allocation7 + $0x24] sm:$0xf]
        %v724 = vld [vmem:[#allocation7 + $0x28] sm:$0xf]
        %v725 = vld [vmem:[#allocation7 + $0x2c] sm:$0xf]
        %v726 = vld [vmem:[#allocation7 + $0x30] sm:$0xf]
        %v727 = vld [vmem:[#allocation7 + $0x34] sm:$0xf]
        %v728 = vld [vmem:[#allocation7 + $0x38] sm:$0xf]
        %v729 = vld [vmem:[#allocation7 + $0x3c] sm:$0xf]
        %v730 = vperm.slane %v257, 2
        %v747 = vunpack.c.l.b16 %v714
        %v748 = vunpack.c.l.b16 %v715
        %v749 = vunpack.c.l.b16 %v716
        %v750 = vunpack.c.l.b16 %v717
        %v751 = vunpack.c.l.b16 %v718
        %v752 = vunpack.c.l.b16 %v719
        %v753 = vunpack.c.l.b16 %v720
        %v754 = vunpack.c.l.b16 %v721
        %v755 = vunpack.c.l.b16 %v722
        %v756 = vunpack.c.l.b16 %v723
        %v757 = vunpack.c.l.b16 %v724
        %v758 = vunpack.c.l.b16 %v725
        %v759 = vunpack.c.l.b16 %v726
        %v760 = vunpack.c.l.b16 %v727
        %v761 = vunpack.c.l.b16 %v728
        %v762 = vunpack.c.l.b16 %v729
        %v763 = vpack.c.b16 %v748, %v747
        %v764 = vpack.c.b16 %v750, %v749
        %v765 = vpack.c.b16 %v752, %v751
        %v766 = vpack.c.b16 %v754, %v753
        %v767 = vpack.c.b16 %v756, %v755
        %v768 = vpack.c.b16 %v758, %v757
        %v769 = vpack.c.b16 %v760, %v759
        %v770 = vpack.c.b16 %v762, %v761
        %779 = vmatpush.bf16.msra.mxu0 %v770
        %780 = vmatpush.bf16.msra.mxu0 %v769
        %781 = vmatpush.bf16.msra.mxu0 %v768
        %782 = vmatpush.bf16.msra.mxu0 %v767
        %783 = vmatpush.bf16.msra.mxu0 %v766
        %784 = vmatpush.bf16.msra.mxu0 %v765
        %785 = vmatpush.bf16.msra.mxu0 %v764
        %786 = vmatpush.bf16.msra.mxu0 %v763
        %787 = vmatmul.bf16.gmra.mxu0 %v704
        %v788 = vpop.f32.mrf.mxu0
        %v789 = vadd.f32 %v730, %v788
        %v790 = vpop.f32.mrf.mxu0
        %v791 = vadd.f32 %v730, %v790
        %792 = vmatmul.bf16.gmra.mxu0 %v705
        %v793 = vpop.f32.mrf.mxu0
        %v794 = vadd.f32 %v730, %v793
        %v795 = vpop.f32.mrf.mxu0
        %v796 = vadd.f32 %v730, %v795
        %797 = vmatmul.bf16.gmra.mxu0 %v706
        %v798 = vpop.f32.mrf.mxu0
        %v799 = vadd.f32 %v730, %v798
        %v800 = vpop.f32.mrf.mxu0
        %v801 = vadd.f32 %v730, %v800
        %802 = vmatmul.bf16.gmra.mxu0 %v707
        %v803 = vpop.f32.mrf.mxu0
        %v804 = vadd.f32 %v730, %v803
        %v805 = vpop.f32.mrf.mxu0
        %v806 = vadd.f32 %v730, %v805
        %807 = vmatmul.bf16.gmra.mxu0 %v708
        %v808 = vpop.f32.mrf.mxu0
        %v809 = vadd.f32 %v730, %v808
        %v810 = vpop.f32.mrf.mxu0
        %v811 = vadd.f32 %v730, %v810
        %812 = vmatmul.bf16.gmra.mxu0 %v709
        %v813 = vpop.f32.mrf.mxu0
        %v814 = vadd.f32 %v730, %v813
        %v815 = vpop.f32.mrf.mxu0
        %v816 = vadd.f32 %v730, %v815
        %817 = vmatmul.bf16.gmra.mxu0 %v710
        %v818 = vpop.f32.mrf.mxu0
        %v819 = vadd.f32 %v730, %v818
        %v820 = vpop.f32.mrf.mxu0
        %v821 = vadd.f32 %v730, %v820
        %822 = vmatmul.bf16.gmra.mxu0 %v711
        %v823 = vpop.f32.mrf.mxu0
        %v824 = vadd.f32 %v730, %v823
        %v825 = vpop.f32.mrf.mxu0
        %v826 = vadd.f32 %v730, %v825
        %827 = vmatmul.bf16.gmra.mxu0 %v712
        %v828 = vpop.f32.mrf.mxu0
        %v829 = vadd.f32 %v730, %v828
        %v830 = vpop.f32.mrf.mxu0
        %v831 = vadd.f32 %v730, %v830
        %832 = vmatmul.bf16.gmra.mxu0 %v713
        %v833 = vpop.f32.mrf.mxu0
        %v834 = vadd.f32 %v730, %v833
        %v835 = vpop.f32.mrf.mxu0
        %836 = vdwg.mxu0
        %v837 = vadd.f32 %v789, %v238
        %v838 = vadd.f32 %v791, %v239
        %v839 = vadd.f32 %v794, %v240
        %v840 = vadd.f32 %v796, %v241
        %v841 = vadd.f32 %v799, %v242
        %v842 = vadd.f32 %v801, %v243
        %v843 = vadd.f32 %v804, %v244
        %v844 = vadd.f32 %v806, %v245
        %v845 = vadd.f32 %v809, %v246
        %v846 = vadd.f32 %v811, %v247
        %v847 = vadd.f32 %v814, %v248
        %v848 = vadd.f32 %v816, %v249
        %v849 = vadd.f32 %v819, %v250
        %v850 = vadd.f32 %v821, %v251
        %v851 = vadd.f32 %v824, %v252
        %v852 = vadd.f32 %v826, %v253
        %v853 = vadd.f32 %v829, %v254
        %v854 = vadd.f32 %v831, %v255
        %v855 = vadd.f32 %v834, %v256
        %856 = vst [vmem:[%s235] sm:$0xff] %v837
        %857 = vst [vmem:[%s235 + $0x8] sm:$0xff] %v838
        %858 = vst [vmem:[%s235 + $0x10] sm:$0xff] %v839
        %859 = vst [vmem:[%s235 + $0x18] sm:$0xff] %v840
        %860 = vst [vmem:[%s235 + $0x20] sm:$0xff] %v841
        %861 = vst [vmem:[%s235 + $0x28] sm:$0xff] %v842
        %862 = vst [vmem:[%s235 + $0x30] sm:$0xff] %v843
        %863 = vst [vmem:[%s235 + $0x38] sm:$0xff] %v844
        %864 = vst [vmem:[%s235 + $0x40] sm:$0xff] %v845
        %865 = vst [vmem:[%s235 + $0x48] sm:$0xff] %v846
        %866 = vst [vmem:[%s235 + $0x50] sm:$0xff] %v847
        %867 = vst [vmem:[%s235 + $0x58] sm:$0xff] %v848
        %868 = vst [vmem:[%s235 + $0x60] sm:$0xff] %v849
        %869 = vst [vmem:[%s235 + $0x68] sm:$0xff] %v850
        %870 = vst [vmem:[%s235 + $0x70] sm:$0xff] %v851
        %871 = vst [vmem:[%s235 + $0x78] sm:$0xff] %v852
        %872 = vst [vmem:[%s235 + $0x80] sm:$0xff] %v853
        %873 = vst [vmem:[%s235 + $0x88] sm:$0xff] %v854
        %874 = vst [vmem:[%s235 + $0x90] sm:$0xff] %v855
        %s875 = sand.u32 %s111, 1
        %s876 = scalar_lea.sflag [#allocation4], %s875
        %s877 = sand.u32 %s111, 1
        %s878 = smul.addr %s877, 152
        %s879 = scalar_lea.vmem [#allocation8], %s878
        // Predicated region
        $region45: #{tpu_custom_call.1} parent=31 // pred_check
          %p880 = pneg %p121
        $region46: #{tpu_custom_call.1} parent=31 // pred_check_branch
          %882 = sbr.rel (%p880) target = $region48
        $region47: #{tpu_custom_call.1} parent=31 // pred_region
          %s883 = smul.u32 19, %s25
          %885 = vsyncadd %s876, 0
          %s886 = sadd.s32 %s26, %s883
          %s887 = smul.addr %s886, 8
          %s888 = scalar_lea.hbm %s3, %s887
          %s889 = sshll.u32 %s879, 4
          %s890 = int_to_ptr.vmem [resolvable:$true] %s889
          %s891 = sshll.u32 %s888, 4
          %s892 = int_to_ptr.hbm [resolvable:$true] %s891
          %897 = dma.vmem_to_hbm [thread:$0]  %s890, 2432, %s892, %s876, 128, 128, 8
        $region48: #{tpu_custom_call.1} parent=31 // pred_fallthru
          _
      $region32: #{tpu_custom_call.1} parent=5 // pred_fallthru
        _
      %p898 = scmp.le.s32.totalorder 2, %s16
      // Predicated region
      $region49: #{tpu_custom_call.1} parent=5 // pred_check
        %p899 = pneg %p898
      $region50: #{tpu_custom_call.1} parent=5 // pred_check_branch
        %901 = sbr.rel (%p899) target = $region52
      $region51: #{tpu_custom_call.1} parent=5 // pred_region
        %s902 = ssub.s32 %s16, 2
        // Predicated region
        $region53: #{tpu_custom_call.1} parent=51 // pred_check
          %p903 = pneg %p127
        $region54: #{tpu_custom_call.1} parent=51 // pred_check_branch
          %905 = sbr.rel (%p903) target = $region56
        $region55: #{tpu_custom_call.1} parent=51 // pred_region
          %s906 = sand.u32 %s112, 1
          %s907 = scalar_lea.sflag [#allocation4], %s906
          %s908 = sand.u32 %s112, 1
          %s909 = smul.addr %s908, 152
          %s910 = scalar_lea.vmem [#allocation8], %s909
          %912 = dma.done %s907, 2432
        $region56: #{tpu_custom_call.1} parent=51 // pred_fallthru
          _
      $region52: #{tpu_custom_call.1} parent=5 // pred_fallthru
        _
    $region6: #{tpu_custom_call.1} parent=1 // loop_footer
      %s20 = sadd.s32 1, %s16
    $region7: #{tpu_custom_call.1} parent=1 // loop_footer_branch
      %15 = sbr.rel target = $region3
    $region8: #{tpu_custom_call.1} parent=1 // loop_exit
      _
    %913 = vsyncpa [#allocation3], 1
    %s914 = scalar_lea.sflag [#allocation3], 1
    %915 = vsyncpa %s914, 1
    %916 = vsyncpa [#allocation6], 1
    %917 = vsyncpa [#allocation4], 1
    %s918 = scalar_lea.sflag [#allocation4], 1
    %919 = vsyncpa %s918, 1

// kernel: tpu_custom_call.1
$region0: #{tpu_custom_call.1}
  #allocation0 [shape = 'u32[]', space=smem, size = 0x4, offset = 0x4, fixed_abs, tag = 'smem constant byte address 0x4 - core index']
  #allocation1 [shape = 'u32[72,128]{1,0:T(1,128)}', space=vmem, size = 0x9000, scoped, tag = 'internal scratch']
  %s0 = inlined_call_operand.hbm [shape: f32[300,128], index: 0, kind: input, shape index: {}]
  %s1 = inlined_call_operand.hbm [shape: f32[3,128], index: 1, kind: input, shape index: {}]
  %s2 = inlined_call_operand.hbm [shape: bf16[128,128], index: 2, kind: input, shape index: {}]
  %s3 = inlined_call_operand.hbm [shape: f32[300,128], index: 3, kind: output, shape index: {}]
  %s4 = sld [smem:[#allocation0]]
  $region57: #{tpu_custom_call.1} parent=0
    _
  %s6 = ssub.s32 1, %s4
  %s7 = scalar_select 0, %s6, %s4
  $region1: #{tpu_custom_call.1} parent=0
    #allocation2 [shape = 'u8[155648]{0}', space=vmem, size = 0x26000, scoped, tag = 'input window, operand 0']
    #allocation3 [shape = 's32[2]{0}', space=sflag, size = 0x8, scoped, tag = 'scoped memory for tpu_custom_call.1']
    #allocation4 [shape = 's32[2]{0}', space=sflag, size = 0x8, scoped, tag = 'scoped memory for tpu_custom_call.1']
    #allocation5 [shape = 'u8[2048]{0}', space=vmem, size = 0x800, scoped, tag = 'input window, operand 1, single buffered']
    #allocation6 [shape = 's32[1]{0}', space=sflag, size = 0x4, scoped, tag = 'scoped memory for tpu_custom_call.1']
    #allocation7 [shape = 'u8[32768]{0}', space=vmem, size = 0x8000, scoped, tag = 'input window, operand 2, single buffered']
    #allocation8 [shape = 'u8[155648]{0}', space=vmem, size = 0x26000, scoped, tag = 'output window, operand 0']
    %8 = vsyncpa [#allocation3], 0
    %s9 = scalar_lea.sflag [#allocation3], 1
    %10 = vsyncpa %s9, 0
    %11 = vsyncpa [#allocation6], 0
    %12 = vsyncpa [#allocation4], 0
    %s13 = scalar_lea.sflag [#allocation4], 1
    %14 = vsyncpa %s13, 0
    loop: start=0, step=1, limit=4
    $region2: #{tpu_custom_call.1} parent=1 // loop_pre_header
      _
    $region3: #{tpu_custom_call.1} parent=1 // loop_header
      %s16 = sphi 0, %s20
      %p17 = scmp.ge.s32.totalorder %s16, 4
      %s23 = sphi 0, %s35
      %s24 = sphi 0, %s31
      %s25 = sphi 0, %s23
      %s26 = sphi 0, %s24
      %s27 = sphi 0, %s25
      %s28 = sphi 0, %s26
      %s38 = sphi 0, %s40
      %s41 = sphi 0, %s38
      %s42 = sphi 0, %s41
      %s58 = sphi 0, %s42
      %s62 = sphi 0, %s62
      %s64 = sphi 0, %s62
      %s65 = sphi 0, %s64
      %s79 = sphi 0, %s65
      %s83 = sphi 0, %s83
      %s85 = sphi 0, %s83
      %s86 = sphi 0, %s85
      %s100 = sphi 0, %s86
      %s108 = sphi 0, %s110
      %s111 = sphi 0, %s108
      %s112 = sphi 0, %s111
      %s128 = sphi 0, %s112
    $region4: #{tpu_custom_call.1} parent=1 // loop_header_branch
      %19 = sbr.rel (%p17) target = $region8
    $region5: #{tpu_custom_call.1} parent=1 // loop_body
      %s21 = ssub.s32 %s16, 1
      %s22 = ssub.s32 %s16, 2
      %s29 = sadd.s32 1, %s24
      %p30 = scmp.ge.s32.totalorder %s29, 1
      %s31 = scalar_select %p30, 0, %s29
      %s32 = sadd.s32 1, %s23
      %s33 = scalar_select %p30, %s32, %s23
      %p34 = scmp.ge.s32.totalorder %s33, 2
      %s35 = scalar_select %p34, 0, %s33
      %s36 = ssub.s32 %s23, %s35
      %p37 = scmp.eq.s32.totalorder %s36, 0
      %s39 = sadd.s32 %s38, 1
      %s40 = scalar_select %p37, %s38, %s39
      %p43 = pneg %p37
      %p44 = scmp.eq.s32.totalorder %s16, 1
      %p45 = por %p43, %p44
      %p46 = scmp.ne.s32.totalorder %s38, %s41
      %p47 = scmp.eq.s32.totalorder %s16, 0
      %p48 = por %p46, %p47
      %p49 = scmp.ne.s32.totalorder %s38, %s41
      %p50 = scmp.eq.s32.totalorder %s21, 1
      %p51 = por %p49, %p50
      %p52 = scmp.ne.s32.totalorder %s41, %s42
      %p53 = scmp.eq.s32.totalorder %s21, 0
      %p54 = por %p52, %p53
      %p55 = scmp.ne.s32.totalorder %s41, %s42
      %p56 = scmp.eq.s32.totalorder %s22, 1
      %p57 = por %p55, %p56
      %p59 = scmp.ne.s32.totalorder %s42, %s58
      %p60 = scmp.eq.s32.totalorder %s22, 0
      %p61 = por %p59, %p60
      %s63 = sadd.s32 %s62, 1
      %p66 = scmp.eq.s32.totalorder %s16, 1
      %p67 = scmp.ne.s32.totalorder %s62, %s64
      %p68 = scmp.eq.s32.totalorder %s16, 0
      %p69 = por %p67, %p68
      %p70 = scmp.ne.s32.totalorder %s62, %s64
      %p71 = scmp.eq.s32.totalorder %s21, 1
      %p72 = por %p70, %p71
      %p73 = scmp.ne.s32.totalorder %s64, %s65
      %p74 = scmp.eq.s32.totalorder %s21, 0
      %p75 = por %p73, %p74
      %p76 = scmp.ne.s32.totalorder %s64, %s65
      %p77 = scmp.eq.s32.totalorder %s22, 1
      %p78 = por %p76, %p77
      %p80 = scmp.ne.s32.totalorder %s65, %s79
      %p81 = scmp.eq.s32.totalorder %s22, 0
      %p82 = por %p80, %p81
      %s84 = sadd.s32 %s83, 1
      %p87 = scmp.eq.s32.totalorder %s16, 1
      %p88 = scmp.ne.s32.totalorder %s83, %s85
      %p89 = scmp.eq.s32.totalorder %s16, 0
      %p90 = por %p88, %p89
      %p91 = scmp.ne.s32.totalorder %s83, %s85
      %p92 = scmp.eq.s32.totalorder %s21, 1
      %p93 = por %p91, %p92
      %p94 = scmp.ne.s32.totalorder %s85, %s86
      %p95 = scmp.eq.s32.totalorder %s21, 0
      %p96 = por %p94, %p95
      %p97 = scmp.ne.s32.totalorder %s85, %s86
      %p98 = scmp.eq.s32.totalorder %s22, 1
      %p99 = por %p97, %p98
      %p101 = scmp.ne.s32.totalorder %s86, %s100
      %p102 = scmp.eq.s32.totalorder %s22, 0
      %p103 = por %p101, %p102
      %s104 = ssub.s32 %s23, %s35
      %s105 = ssub.s32 %s24, %s31
      %s106 = sor.u32 %s104, %s105
      %p107 = scmp.eq.s32.totalorder %s106, 0
      %s109 = sadd.s32 %s108, 1
      %s110 = scalar_select %p107, %s108, %s109
      %p113 = pneg %p107
      %p114 = scmp.eq.s32.totalorder %s16, 1
      %p115 = por %p113, %p114
      %p116 = scmp.ne.s32.totalorder %s108, %s111
      %p117 = scmp.eq.s32.totalorder %s16, 0
      %p118 = por %p116, %p117
      %p119 = scmp.ne.s32.totalorder %s108, %s111
      %p120 = scmp.eq.s32.totalorder %s21, 1
      %p121 = por %p119, %p120
      %p122 = scmp.ne.s32.totalorder %s111, %s112
      %p123 = scmp.eq.s32.totalorder %s21, 0
      %p124 = por %p122, %p123
      %p125 = scmp.ne.s32.totalorder %s111, %s112
      %p126 = scmp.eq.s32.totalorder %s22, 1
      %p127 = por %p125, %p126
      %p129 = scmp.ne.s32.totalorder %s112, %s128
      %p130 = scmp.eq.s32.totalorder %s22, 0
      %p131 = por %p129, %p130
      %p132 = scmp.le.s32.totalorder 1, %s16
      %p133 = scmp.lt.s32.totalorder %s16, 3
      %p134 = pnand %p132, %p133
      %p135 = pneg %p134
      // Predicated region
      $region9: #{tpu_custom_call.1} parent=5 // pred_check
        _
      $region10: #{tpu_custom_call.1} parent=5 // pred_check_branch
        %137 = sbr.rel (%p134) target = $region12
      $region11: #{tpu_custom_call.1} parent=5 // pred_region
        %s138 = ssub.s32 %s16, 1
        // Predicated region
        $region13: #{tpu_custom_call.1} parent=11 // pred_check
          %p139 = pneg %p75
        $region14: #{tpu_custom_call.1} parent=11 // pred_check_branch
          %141 = sbr.rel (%p139) target = $region16
        $region15: #{tpu_custom_call.1} parent=11 // pred_region
          %143 = vsyncadd [#allocation6], 0
          %s145 = sshll.u32 %s1, 4
          %s146 = int_to_ptr.hbm [resolvable:$true] %s145
          %s147 = sshll.u32 [#allocation5], 4
          %s148 = int_to_ptr.vmem [resolvable:$true] %s147
          %150 = dma.hbm_to_vmem [thread:$0]  %s146, 64, %s148, [#allocation6]
        $region16: #{tpu_custom_call.1} parent=11 // pred_fallthru
          _
        // Predicated region
        $region17: #{tpu_custom_call.1} parent=11 // pred_check
          %p151 = pneg %p96
        $region18: #{tpu_custom_call.1} parent=11 // pred_check_branch
          %153 = sbr.rel (%p151) target = $region20
        $region19: #{tpu_custom_call.1} parent=11 // pred_region
          %155 = vsyncadd [#allocation6], 0
          %s156 = sshll.u32 %s2, 4
          %s157 = int_to_ptr.hbm [resolvable:$true] %s156
          %s158 = sshll.u32 [#allocation7], 4
          %s159 = int_to_ptr.vmem [resolvable:$true] %s158
          %164 = dma.hbm_to_vmem [thread:$0]  %s157, 1024, %s159, [#allocation6], 64, 64, 4
        $region20: #{tpu_custom_call.1} parent=11 // pred_fallthru
          _
      $region12: #{tpu_custom_call.1} parent=5 // pred_fallthru
        _
      %p165 = scmp.lt.s32.totalorder %s16, 2
      // Predicated region
      $region21: #{tpu_custom_call.1} parent=5 // pred_check
        %p166 = pneg %p165
      $region22: #{tpu_custom_call.1} parent=5 // pred_check_branch
        %168 = sbr.rel (%p166) target = $region24
      $region23: #{tpu_custom_call.1} parent=5 // pred_region
        // Predicated region
        $region25: #{tpu_custom_call.1} parent=23 // pred_check
          %p169 = pneg %p48
        $region26: #{tpu_custom_call.1} parent=23 // pred_check_branch
          %171 = sbr.rel (%p169) target = $region28
        $region27: #{tpu_custom_call.1} parent=23 // pred_region
          %s172 = sand.u32 %s38, 1
          %s173 = scalar_lea.sflag [#allocation3], %s172
          %s174 = sand.u32 %s38, 1
          %s175 = smul.addr %s174, 152
          %s176 = scalar_lea.vmem [#allocation2], %s175
          %s177 = smul.u32 19, %s23
          %179 = vsyncadd %s173, 0
          %s180 = smul.addr %s177, 8
          %s181 = scalar_lea.hbm %s0, %s180
          %s182 = sshll.u32 %s181, 4
          %s183 = int_to_ptr.hbm [resolvable:$true] %s182
          %s184 = sshll.u32 %s176, 4
          %s185 = int_to_ptr.vmem [resolvable:$true] %s184
          %190 = dma.hbm_to_vmem [thread:$0]  %s183, 2432, %s185, %s173, 128, 128, 8
        $region28: #{tpu_custom_call.1} parent=23 // pred_fallthru
          _
      $region24: #{tpu_custom_call.1} parent=5 // pred_fallthru
        _
      %p191 = scmp.le.s32.totalorder 1, %s16
      %p192 = scmp.lt.s32.totalorder %s16, 3
      %p193 = pnand %p191, %p192
      %p194 = pneg %p193
      // Predicated region
      $region29: #{tpu_custom_call.1} parent=5 // pred_check
        _
      $region30: #{tpu_custom_call.1} parent=5 // pred_check_branch
        %196 = sbr.rel (%p193) target = $region32
      $region31: #{tpu_custom_call.1} parent=5 // pred_region
        %s197 = ssub.s32 %s16, 1
        %s198 = sand.u32 %s41, 1
        %s199 = scalar_lea.sflag [#allocation3], %s198
        %s200 = sand.u32 %s41, 1
        %s201 = smul.addr %s200, 152
        %s202 = scalar_lea.vmem [#allocation2], %s201
        // Predicated region
        $region33: #{tpu_custom_call.1} parent=31 // pred_check
          %p203 = pneg %p54
        $region34: #{tpu_custom_call.1} parent=31 // pred_check_branch
          %205 = sbr.rel (%p203) target = $region36
        $region35: #{tpu_custom_call.1} parent=31 // pred_region
          %207 = dma.done %s199, 2432
        $region36: #{tpu_custom_call.1} parent=31 // pred_fallthru
          _
        // Predicated region
        $region37: #{tpu_custom_call.1} parent=31 // pred_check
          %p208 = pneg %p75
        $region38: #{tpu_custom_call.1} parent=31 // pred_check_branch
          %210 = sbr.rel (%p208) target = $region40
        $region39: #{tpu_custom_call.1} parent=31 // pred_region
          %212 = dma.done [#allocation6], 64
        $region40: #{tpu_custom_call.1} parent=31 // pred_fallthru
          _
        // Predicated region
        $region41: #{tpu_custom_call.1} parent=31 // pred_check
          %p213 = pneg %p96
        $region42: #{tpu_custom_call.1} parent=31 // pred_check_branch
          %215 = sbr.rel (%p213) target = $region44
        $region43: #{tpu_custom_call.1} parent=31 // pred_region
          %217 = dma.done [#allocation6], 1024
        $region44: #{tpu_custom_call.1} parent=31 // pred_fallthru
          _
        %s218 = sand.u32 %s41, 1
        %s219 = scalar_lea.sflag [#allocation3], %s218
        %s220 = sand.u32 %s41, 1
        %s221 = smul.addr %s220, 152
        %s222 = scalar_lea.vmem [#allocation2], %s221
        %p223 = pneg %p54
        %p224 = pneg %p51
        %p225 = pneg %p75
        %p226 = pneg %p72
        %p227 = pneg %p96
        %p228 = pneg %p93
        %p229 = pneg %p124
        %p230 = pneg %p121
        %s231 = sand.u32 %s111, 1
        %s232 = scalar_lea.sflag [#allocation4], %s231
        %s233 = sand.u32 %s111, 1
        %s234 = smul.addr %s233, 152
        %s235 = scalar_lea.vmem [#allocation8], %s234
        %s236 = smul.u32 19, %s25
        %s237 = smul.u32 19, %s25
        %v238 = vld [vmem:[%s202] sm:$0xff]
        %v239 = vld [vmem:[%s202 + $0x8] sm:$0xff]
        %v240 = vld [vmem:[%s202 + $0x10] sm:$0xff]
        %v241 = vld [vmem:[%s202 + $0x18] sm:$0xff]
        %v242 = vld [vmem:[%s202 + $0x20] sm:$0xff]
        %v243 = vld [vmem:[%s202 + $0x28] sm:$0xff]
        %v244 = vld [vmem:[%s202 + $0x30] sm:$0xff]
        %v245 = vld [vmem:[%s202 + $0x38] sm:$0xff]
        %v246 = vld [vmem:[%s202 + $0x40] sm:$0xff]
        %v247 = vld [vmem:[%s202 + $0x48] sm:$0xff]
        %v248 = vld [vmem:[%s202 + $0x50] sm:$0xff]
        %v249 = vld [vmem:[%s202 + $0x58] sm:$0xff]
        %v250 = vld [vmem:[%s202 + $0x60] sm:$0xff]
        %v251 = vld [vmem:[%s202 + $0x68] sm:$0xff]
        %v252 = vld [vmem:[%s202 + $0x70] sm:$0xff]
        %v253 = vld [vmem:[%s202 + $0x78] sm:$0xff]
        %v254 = vld [vmem:[%s202 + $0x80] sm:$0xff]
        %v255 = vld [vmem:[%s202 + $0x88] sm:$0xff]
        %v256 = vld [vmem:[%s202 + $0x90] sm:$0xff]
        %v257 = vld [vmem:[#allocation5] sm:$0x7]
        %258 = vadd.xlane.f32.xlu0 %v238
        %v259 = vpop.xlane.xlu0 %258
        %260 = vadd.xlane.f32.xlu0 %v239
        %v261 = vpop.xlane.xlu0 %260
        %262 = vadd.xlane.f32.xlu0 %v240
        %v263 = vpop.xlane.xlu0 %262
        %264 = vadd.xlane.f32.xlu0 %v241
        %v265 = vpop.xlane.xlu0 %264
        %266 = vadd.xlane.f32.xlu0 %v242
        %v267 = vpop.xlane.xlu0 %266
        %268 = vadd.xlane.f32.xlu0 %v243
        %v269 = vpop.xlane.xlu0 %268
        %270 = vadd.xlane.f32.xlu0 %v244
        %v271 = vpop.xlane.xlu0 %270
        %272 = vadd.xlane.f32.xlu0 %v245
        %v273 = vpop.xlane.xlu0 %272
        %274 = vadd.xlane.f32.xlu0 %v246
        %v275 = vpop.xlane.xlu0 %274
        %276 = vadd.xlane.f32.xlu0 %v247
        %v277 = vpop.xlane.xlu0 %276
        %278 = vadd.xlane.f32.xlu0 %v248
        %v279 = vpop.xlane.xlu0 %278
        %280 = vadd.xlane.f32.xlu0 %v249
        %v281 = vpop.xlane.xlu0 %280
        %282 = vadd.xlane.f32.xlu0 %v250
        %v283 = vpop.xlane.xlu0 %282
        %284 = vadd.xlane.f32.xlu0 %v251
        %v285 = vpop.xlane.xlu0 %284
        %286 = vadd.xlane.f32.xlu0 %v252
        %v287 = vpop.xlane.xlu0 %286
        %288 = vadd.xlane.f32.xlu0 %v253
        %v289 = vpop.xlane.xlu0 %288
        %290 = vadd.xlane.f32.xlu0 %v254
        %v291 = vpop.xlane.xlu0 %290
        %292 = vadd.xlane.f32.xlu0 %v255
        %v293 = vpop.xlane.xlu0 %292
        %294 = vadd.xlane.f32.xlu0 %v256
        %v295 = vpop.xlane.xlu0 %294
        %v296 = vrcp.pop 128.0
        %v297 = vmul.f32 128.0, %v296
        %v298 = vsub.f32 1.0, %v297
        %v299 = vmul.f32 %v296, %v298
        %v300 = vadd.f32 %v296, %v299
        %vm301 = vweird.f32 %v296
        %v302 = vsel %vm301, %v296, %v300
        %v303 = vmul.f32 %v259, %v302
        %v304 = vmul.f32 %v261, %v302
        %v305 = vmul.f32 %v263, %v302
        %v306 = vmul.f32 %v265, %v302
        %v307 = vmul.f32 %v267, %v302
        %v308 = vmul.f32 %v269, %v302
        %v309 = vmul.f32 %v271, %v302
        %v310 = vmul.f32 %v273, %v302
        %v311 = vmul.f32 %v275, %v302
        %v312 = vmul.f32 %v277, %v302
        %v313 = vmul.f32 %v279, %v302
        %v314 = vmul.f32 %v281, %v302
        %v315 = vmul.f32 %v283, %v302
        %v316 = vmul.f32 %v285, %v302
        %v317 = vmul.f32 %v287, %v302
        %v318 = vmul.f32 %v289, %v302
        %v319 = vmul.f32 %v291, %v302
        %v320 = vmul.f32 %v293, %v302
        %v321 = vmul.f32 %v295, %v302
        %v322 = vsub.f32 %v238, %v303
        %v323 = vsub.f32 %v239, %v304
        %v324 = vsub.f32 %v240, %v305
        %v325 = vsub.f32 %v241, %v306
        %v326 = vsub.f32 %v242, %v307
        %v327 = vsub.f32 %v243, %v308
        %v328 = vsub.f32 %v244, %v309
        %v329 = vsub.f32 %v245, %v310
        %v330 = vsub.f32 %v246, %v311
        %v331 = vsub.f32 %v247, %v312
        %v332 = vsub.f32 %v248, %v313
        %v333 = vsub.f32 %v249, %v314
        %v334 = vsub.f32 %v250, %v315
        %v335 = vsub.f32 %v251, %v316
        %v336 = vsub.f32 %v252, %v317
        %v337 = vsub.f32 %v253, %v318
        %v338 = vsub.f32 %v254, %v319
        %v339 = vsub.f32 %v255, %v320
        %v340 = vsub.f32 %v256, %v321
        %v341 = vmul.f32 %v322, %v322
        %v342 = vmul.f32 %v323, %v323
        %v343 = vmul.f32 %v324, %v324
        %v344 = vmul.f32 %v325, %v325
        %v345 = vmul.f32 %v326, %v326
        %v346 = vmul.f32 %v327, %v327
        %v347 = vmul.f32 %v328, %v328
        %v348 = vmul.f32 %v329, %v329
        %v349 = vmul.f32 %v330, %v330
        %v350 = vmul.f32 %v331, %v331
        %v351 = vmul.f32 %v332, %v332
        %v352 = vmul.f32 %v333, %v333
        %v353 = vmul.f32 %v334, %v334
        %v354 = vmul.f32 %v335, %v335
        %v355 = vmul.f32 %v336, %v336
        %v356 = vmul.f32 %v337, %v337
        %v357 = vmul.f32 %v338, %v338
        %v358 = vmul.f32 %v339, %v339
        %v359 = vmul.f32 %v340, %v340
        %360 = vadd.xlane.f32.xlu0 %v341
        %v361 = vpop.xlane.xlu0 %360
        %362 = vadd.xlane.f32.xlu0 %v342
        %v363 = vpop.xlane.xlu0 %362
        %364 = vadd.xlane.f32.xlu0 %v343
        %v365 = vpop.xlane.xlu0 %364
        %366 = vadd.xlane.f32.xlu0 %v344
        %v367 = vpop.xlane.xlu0 %366
        %368 = vadd.xlane.f32.xlu0 %v345
        %v369 = vpop.xlane.xlu0 %368
        %370 = vadd.xlane.f32.xlu0 %v346
        %v371 = vpop.xlane.xlu0 %370
        %372 = vadd.xlane.f32.xlu0 %v347
        %v373 = vpop.xlane.xlu0 %372
        %374 = vadd.xlane.f32.xlu0 %v348
        %v375 = vpop.xlane.xlu0 %374
        %376 = vadd.xlane.f32.xlu0 %v349
        %v377 = vpop.xlane.xlu0 %376
        %378 = vadd.xlane.f32.xlu0 %v350
        %v379 = vpop.xlane.xlu0 %378
        %380 = vadd.xlane.f32.xlu0 %v351
        %v381 = vpop.xlane.xlu0 %380
        %382 = vadd.xlane.f32.xlu0 %v352
        %v383 = vpop.xlane.xlu0 %382
        %384 = vadd.xlane.f32.xlu0 %v353
        %v385 = vpop.xlane.xlu0 %384
        %386 = vadd.xlane.f32.xlu0 %v354
        %v387 = vpop.xlane.xlu0 %386
        %388 = vadd.xlane.f32.xlu0 %v355
        %v389 = vpop.xlane.xlu0 %388
        %390 = vadd.xlane.f32.xlu0 %v356
        %v391 = vpop.xlane.xlu0 %390
        %392 = vadd.xlane.f32.xlu0 %v357
        %v393 = vpop.xlane.xlu0 %392
        %394 = vadd.xlane.f32.xlu0 %v358
        %v395 = vpop.xlane.xlu0 %394
        %396 = vadd.xlane.f32.xlu0 %v359
        %v397 = vpop.xlane.xlu0 %396
        %v398 = vmul.f32 %v361, %v302
        %v399 = vmul.f32 %v363, %v302
        %v400 = vmul.f32 %v365, %v302
        %v401 = vmul.f32 %v367, %v302
        %v402 = vmul.f32 %v369, %v302
        %v403 = vmul.f32 %v371, %v302
        %v404 = vmul.f32 %v373, %v302
        %v405 = vmul.f32 %v375, %v302
        %v406 = vmul.f32 %v377, %v302
        %v407 = vmul.f32 %v379, %v302
        %v408 = vmul.f32 %v381, %v302
        %v409 = vmul.f32 %v383, %v302
        %v410 = vmul.f32 %v385, %v302
        %v411 = vmul.f32 %v387, %v302
        %v412 = vmul.f32 %v389, %v302
        %v413 = vmul.f32 %v391, %v302
        %v414 = vmul.f32 %v393, %v302
        %v415 = vmul.f32 %v395, %v302
        %v416 = vmul.f32 %v397, %v302
        %v417 = vadd.f32 %v398, 1e-05
        %v418 = vadd.f32 %v399, 1e-05
        %v419 = vadd.f32 %v400, 1e-05
        %v420 = vadd.f32 %v401, 1e-05
        %v421 = vadd.f32 %v402, 1e-05
        %v422 = vadd.f32 %v403, 1e-05
        %v423 = vadd.f32 %v404, 1e-05
        %v424 = vadd.f32 %v405, 1e-05
        %v425 = vadd.f32 %v406, 1e-05
        %v426 = vadd.f32 %v407, 1e-05
        %v427 = vadd.f32 %v408, 1e-05
        %v428 = vadd.f32 %v409, 1e-05
        %v429 = vadd.f32 %v410, 1e-05
        %v430 = vadd.f32 %v411, 1e-05
        %v431 = vadd.f32 %v412, 1e-05
        %v432 = vadd.f32 %v413, 1e-05
        %v433 = vadd.f32 %v414, 1e-05
        %v434 = vadd.f32 %v415, 1e-05
        %v435 = vadd.f32 %v416, 1e-05
        %v436 = vrsqrt.pop %v417
        %v437 = vmul.f32 %v436, %v417
        %v438 = vmul.f32 %v437, %v436
        %v439 = vmul.f32 0.5, %v438
        %v440 = vsub.f32 1.5, %v439
        %v441 = vmul.f32 %v436, %v440
        %vm442 = vweird.f32 %v417
        %vm443 = vweird.f32 %v436
        %vm444 = vmor %vm442, %vm443
        %v445 = vsel %vm444, %v436, %v441
        %v446 = vrsqrt.pop %v418
        %v447 = vmul.f32 %v446, %v418
        %v448 = vmul.f32 %v447, %v446
        %v449 = vmul.f32 0.5, %v448
        %v450 = vsub.f32 1.5, %v449
        %v451 = vmul.f32 %v446, %v450
        %vm452 = vweird.f32 %v418
        %vm453 = vweird.f32 %v446
        %vm454 = vmor %vm452, %vm453
        %v455 = vsel %vm454, %v446, %v451
        %v456 = vrsqrt.pop %v419
        %v457 = vmul.f32 %v456, %v419
        %v458 = vmul.f32 %v457, %v456
        %v459 = vmul.f32 0.5, %v458
        %v460 = vsub.f32 1.5, %v459
        %v461 = vmul.f32 %v456, %v460
        %vm462 = vweird.f32 %v419
        %vm463 = vweird.f32 %v456
        %vm464 = vmor %vm462, %vm463
        %v465 = vsel %vm464, %v456, %v461
        %v466 = vrsqrt.pop %v420
        %v467 = vmul.f32 %v466, %v420
        %v468 = vmul.f32 %v467, %v466
        %v469 = vmul.f32 0.5, %v468
        %v470 = vsub.f32 1.5, %v469
        %v471 = vmul.f32 %v466, %v470
        %vm472 = vweird.f32 %v420
        %vm473 = vweird.f32 %v466
        %vm474 = vmor %vm472, %vm473
        %v475 = vsel %vm474, %v466, %v471
        %v476 = vrsqrt.pop %v421
        %v477 = vmul.f32 %v476, %v421
        %v478 = vmul.f32 %v477, %v476
        %v479 = vmul.f32 0.5, %v478
        %v480 = vsub.f32 1.5, %v479
        %v481 = vmul.f32 %v476, %v480
        %vm482 = vweird.f32 %v421
        %vm483 = vweird.f32 %v476
        %vm484 = vmor %vm482, %vm483
        %v485 = vsel %vm484, %v476, %v481
        %v486 = vrsqrt.pop %v422
        %v487 = vmul.f32 %v486, %v422
        %v488 = vmul.f32 %v487, %v486
        %v489 = vmul.f32 0.5, %v488
        %v490 = vsub.f32 1.5, %v489
        %v491 = vmul.f32 %v486, %v490
        %vm492 = vweird.f32 %v422
        %vm493 = vweird.f32 %v486
        %vm494 = vmor %vm492, %vm493
        %v495 = vsel %vm494, %v486, %v491
        %v496 = vrsqrt.pop %v423
        %v497 = vmul.f32 %v496, %v423
        %v498 = vmul.f32 %v497, %v496
        %v499 = vmul.f32 0.5, %v498
        %v500 = vsub.f32 1.5, %v499
        %v501 = vmul.f32 %v496, %v500
        %vm502 = vweird.f32 %v423
        %vm503 = vweird.f32 %v496
        %vm504 = vmor %vm502, %vm503
        %v505 = vsel %vm504, %v496, %v501
        %v506 = vrsqrt.pop %v424
        %v507 = vmul.f32 %v506, %v424
        %v508 = vmul.f32 %v507, %v506
        %v509 = vmul.f32 0.5, %v508
        %v510 = vsub.f32 1.5, %v509
        %v511 = vmul.f32 %v506, %v510
        %vm512 = vweird.f32 %v424
        %vm513 = vweird.f32 %v506
        %vm514 = vmor %vm512, %vm513
        %v515 = vsel %vm514, %v506, %v511
        %v516 = vrsqrt.pop %v425
        %v517 = vmul.f32 %v516, %v425
        %v518 = vmul.f32 %v517, %v516
        %v519 = vmul.f32 0.5, %v518
        %v520 = vsub.f32 1.5, %v519
        %v521 = vmul.f32 %v516, %v520
        %vm522 = vweird.f32 %v425
        %vm523 = vweird.f32 %v516
        %vm524 = vmor %vm522, %vm523
        %v525 = vsel %vm524, %v516, %v521
        %v526 = vrsqrt.pop %v426
        %v527 = vmul.f32 %v526, %v426
        %v528 = vmul.f32 %v527, %v526
        %v529 = vmul.f32 0.5, %v528
        %v530 = vsub.f32 1.5, %v529
        %v531 = vmul.f32 %v526, %v530
        %vm532 = vweird.f32 %v426
        %vm533 = vweird.f32 %v526
        %vm534 = vmor %vm532, %vm533
        %v535 = vsel %vm534, %v526, %v531
        %v536 = vrsqrt.pop %v427
        %v537 = vmul.f32 %v536, %v427
        %v538 = vmul.f32 %v537, %v536
        %v539 = vmul.f32 0.5, %v538
        %v540 = vsub.f32 1.5, %v539
        %v541 = vmul.f32 %v536, %v540
        %vm542 = vweird.f32 %v427
        %vm543 = vweird.f32 %v536
        %vm544 = vmor %vm542, %vm543
        %v545 = vsel %vm544, %v536, %v541
        %v546 = vrsqrt.pop %v428
        %v547 = vmul.f32 %v546, %v428
        %v548 = vmul.f32 %v547, %v546
        %v549 = vmul.f32 0.5, %v548
        %v550 = vsub.f32 1.5, %v549
        %v551 = vmul.f32 %v546, %v550
        %vm552 = vweird.f32 %v428
        %vm553 = vweird.f32 %v546
        %vm554 = vmor %vm552, %vm553
        %v555 = vsel %vm554, %v546, %v551
        %v556 = vrsqrt.pop %v429
        %v557 = vmul.f32 %v556, %v429
        %v558 = vmul.f32 %v557, %v556
        %v559 = vmul.f32 0.5, %v558
        %v560 = vsub.f32 1.5, %v559
        %v561 = vmul.f32 %v556, %v560
        %vm562 = vweird.f32 %v429
        %vm563 = vweird.f32 %v556
        %vm564 = vmor %vm562, %vm563
        %v565 = vsel %vm564, %v556, %v561
        %v566 = vrsqrt.pop %v430
        %v567 = vmul.f32 %v566, %v430
        %v568 = vmul.f32 %v567, %v566
        %v569 = vmul.f32 0.5, %v568
        %v570 = vsub.f32 1.5, %v569
        %v571 = vmul.f32 %v566, %v570
        %vm572 = vweird.f32 %v430
        %vm573 = vweird.f32 %v566
        %vm574 = vmor %vm572, %vm573
        %v575 = vsel %vm574, %v566, %v571
        %v576 = vrsqrt.pop %v431
        %v577 = vmul.f32 %v576, %v431
        %v578 = vmul.f32 %v577, %v576
        %v579 = vmul.f32 0.5, %v578
        %v580 = vsub.f32 1.5, %v579
        %v581 = vmul.f32 %v576, %v580
        %vm582 = vweird.f32 %v431
        %vm583 = vweird.f32 %v576
        %vm584 = vmor %vm582, %vm583
        %v585 = vsel %vm584, %v576, %v581
        %v586 = vrsqrt.pop %v432
        %v587 = vmul.f32 %v586, %v432
        %v588 = vmul.f32 %v587, %v586
        %v589 = vmul.f32 0.5, %v588
        %v590 = vsub.f32 1.5, %v589
        %v591 = vmul.f32 %v586, %v590
        %vm592 = vweird.f32 %v432
        %vm593 = vweird.f32 %v586
        %vm594 = vmor %vm592, %vm593
        %v595 = vsel %vm594, %v586, %v591
        %v596 = vrsqrt.pop %v433
        %v597 = vmul.f32 %v596, %v433
        %v598 = vmul.f32 %v597, %v596
        %v599 = vmul.f32 0.5, %v598
        %v600 = vsub.f32 1.5, %v599
        %v601 = vmul.f32 %v596, %v600
        %vm602 = vweird.f32 %v433
        %vm603 = vweird.f32 %v596
        %vm604 = vmor %vm602, %vm603
        %v605 = vsel %vm604, %v596, %v601
        %v606 = vrsqrt.pop %v434
        %v607 = vmul.f32 %v606, %v434
        %v608 = vmul.f32 %v607, %v606
        %v609 = vmul.f32 0.5, %v608
        %v610 = vsub.f32 1.5, %v609
        %v611 = vmul.f32 %v606, %v610
        %vm612 = vweird.f32 %v434
        %vm613 = vweird.f32 %v606
        %vm614 = vmor %vm612, %vm613
        %v615 = vsel %vm614, %v606, %v611
        %v616 = vrsqrt.pop %v435
        %v617 = vmul.f32 %v616, %v435
        %v618 = vmul.f32 %v617, %v616
        %v619 = vmul.f32 0.5, %v618
        %v620 = vsub.f32 1.5, %v619
        %v621 = vmul.f32 %v616, %v620
        %vm622 = vweird.f32 %v435
        %vm623 = vweird.f32 %v616
        %vm624 = vmor %vm622, %vm623
        %v625 = vsel %vm624, %v616, %v621
        %v626 = vmul.f32 %v322, %v445
        %v627 = vmul.f32 %v323, %v455
        %v628 = vmul.f32 %v324, %v465
        %v629 = vmul.f32 %v325, %v475
        %v630 = vmul.f32 %v326, %v485
        %v631 = vmul.f32 %v327, %v495
        %v632 = vmul.f32 %v328, %v505
        %v633 = vmul.f32 %v329, %v515
        %v634 = vmul.f32 %v330, %v525
        %v635 = vmul.f32 %v331, %v535
        %v636 = vmul.f32 %v332, %v545
        %v637 = vmul.f32 %v333, %v555
        %v638 = vmul.f32 %v334, %v565
        %v639 = vmul.f32 %v335, %v575
        %v640 = vmul.f32 %v336, %v585
        %v641 = vmul.f32 %v337, %v595
        %v642 = vmul.f32 %v338, %v605
        %v643 = vmul.f32 %v339, %v615
        %v644 = vmul.f32 %v340, %v625
        %v645 = vperm.slane %v257, 0
        %v646 = vmul.f32 %v626, %v645
        %v647 = vmul.f32 %v627, %v645
        %v648 = vmul.f32 %v628, %v645
        %v649 = vmul.f32 %v629, %v645
        %v650 = vmul.f32 %v630, %v645
        %v651 = vmul.f32 %v631, %v645
        %v652 = vmul.f32 %v632, %v645
        %v653 = vmul.f32 %v633, %v645
        %v654 = vmul.f32 %v634, %v645
        %v655 = vmul.f32 %v635, %v645
        %v656 = vmul.f32 %v636, %v645
        %v657 = vmul.f32 %v637, %v645
        %v658 = vmul.f32 %v638, %v645
        %v659 = vmul.f32 %v639, %v645
        %v660 = vmul.f32 %v640, %v645
        %v661 = vmul.f32 %v641, %v645
        %v662 = vmul.f32 %v642, %v645
        %v663 = vmul.f32 %v643, %v645
        %v664 = vmul.f32 %v644, %v645
        %v665 = vperm.slane %v257, 1
        %v666 = vadd.f32 %v646, %v665
        %v667 = vadd.f32 %v647, %v665
        %v668 = vadd.f32 %v648, %v665
        %v669 = vadd.f32 %v649, %v665
        %v670 = vadd.f32 %v650, %v665
        %v671 = vadd.f32 %v651, %v665
        %v672 = vadd.f32 %v652, %v665
        %v673 = vadd.f32 %v653, %v665
        %v674 = vadd.f32 %v654, %v665
        %v675 = vadd.f32 %v655, %v665
        %v676 = vadd.f32 %v656, %v665
        %v677 = vadd.f32 %v657, %v665
        %v678 = vadd.f32 %v658, %v665
        %v679 = vadd.f32 %v659, %v665
        %v680 = vadd.f32 %v660, %v665
        %v681 = vadd.f32 %v661, %v665
        %v682 = vadd.f32 %v662, %v665
        %v683 = vadd.f32 %v663, %v665
        %v684 = vadd.f32 %v664, %v665
        %v685 = vmax.f32 %v666, 0.0
        %v686 = vmax.f32 %v667, 0.0
        %v687 = vmax.f32 %v668, 0.0
        %v688 = vmax.f32 %v669, 0.0
        %v689 = vmax.f32 %v670, 0.0
        %v690 = vmax.f32 %v671, 0.0
        %v691 = vmax.f32 %v672, 0.0
        %v692 = vmax.f32 %v673, 0.0
        %v693 = vmax.f32 %v674, 0.0
        %v694 = vmax.f32 %v675, 0.0
        %v695 = vmax.f32 %v676, 0.0
        %v696 = vmax.f32 %v677, 0.0
        %v697 = vmax.f32 %v678, 0.0
        %v698 = vmax.f32 %v679, 0.0
        %v699 = vmax.f32 %v680, 0.0
        %v700 = vmax.f32 %v681, 0.0
        %v701 = vmax.f32 %v682, 0.0
        %v702 = vmax.f32 %v683, 0.0
        %v703 = vmax.f32 %v684, 0.0
        %v704 = vpack.c.bf16 %v686, %v685
        %v705 = vpack.c.bf16 %v688, %v687
        %v706 = vpack.c.bf16 %v690, %v689
        %v707 = vpack.c.bf16 %v692, %v691
        %v708 = vpack.c.bf16 %v694, %v693
        %v709 = vpack.c.bf16 %v696, %v695
        %v710 = vpack.c.bf16 %v698, %v697
        %v711 = vpack.c.bf16 %v700, %v699
        %v712 = vpack.c.bf16 %v702, %v701
        %v713 = vpack.c.bf16 %v703, %v703
        %v714 = vld [vmem:[#allocation7] sm:$0xf]
        %v715 = vld [vmem:[#allocation7 + $0x4] sm:$0xf]
        %v716 = vld [vmem:[#allocation7 + $0x8] sm:$0xf]
        %v717 = vld [vmem:[#allocation7 + $0xc] sm:$0xf]
        %v718 = vld [vmem:[#allocation7 + $0x10] sm:$0xf]
        %v719 = vld [vmem:[#allocation7 + $0x14] sm:$0xf]
        %v720 = vld [vmem:[#allocation7 + $0x18] sm:$0xf]
        %v721 = vld [vmem:[#allocation7 + $0x1c] sm:$0xf]
        %v722 = vld [vmem:[#allocation7 + $0x20] sm:$0xf]
        %v723 = vld [vmem:[#allocation7 + $0x24] sm:$0xf]
        %v724 = vld [vmem:[#allocation7 + $0x28] sm:$0xf]
        %v725 = vld [vmem:[#allocation7 + $0x2c] sm:$0xf]
        %v726 = vld [vmem:[#allocation7 + $0x30] sm:$0xf]
        %v727 = vld [vmem:[#allocation7 + $0x34] sm:$0xf]
        %v728 = vld [vmem:[#allocation7 + $0x38] sm:$0xf]
        %v729 = vld [vmem:[#allocation7 + $0x3c] sm:$0xf]
        %v730 = vperm.slane %v257, 2
        %v747 = vunpack.c.l.b16 %v714
        %v748 = vunpack.c.l.b16 %v715
        %v749 = vunpack.c.l.b16 %v716
        %v750 = vunpack.c.l.b16 %v717
        %v751 = vunpack.c.l.b16 %v718
        %v752 = vunpack.c.l.b16 %v719
        %v753 = vunpack.c.l.b16 %v720
        %v754 = vunpack.c.l.b16 %v721
        %v755 = vunpack.c.l.b16 %v722
        %v756 = vunpack.c.l.b16 %v723
        %v757 = vunpack.c.l.b16 %v724
        %v758 = vunpack.c.l.b16 %v725
        %v759 = vunpack.c.l.b16 %v726
        %v760 = vunpack.c.l.b16 %v727
        %v761 = vunpack.c.l.b16 %v728
        %v762 = vunpack.c.l.b16 %v729
        %v763 = vpack.c.b16 %v748, %v747
        %v764 = vpack.c.b16 %v750, %v749
        %v765 = vpack.c.b16 %v752, %v751
        %v766 = vpack.c.b16 %v754, %v753
        %v767 = vpack.c.b16 %v756, %v755
        %v768 = vpack.c.b16 %v758, %v757
        %v769 = vpack.c.b16 %v760, %v759
        %v770 = vpack.c.b16 %v762, %v761
        %779 = vmatpush.bf16.msra.mxu0 %v770
        %780 = vmatpush.bf16.msra.mxu0 %v769
        %781 = vmatpush.bf16.msra.mxu0 %v768
        %782 = vmatpush.bf16.msra.mxu0 %v767
        %783 = vmatpush.bf16.msra.mxu0 %v766
        %784 = vmatpush.bf16.msra.mxu0 %v765
        %785 = vmatpush.bf16.msra.mxu0 %v764
        %786 = vmatpush.bf16.msra.mxu0 %v763
        %787 = vmatmul.bf16.gmra.mxu0 %v704
        %v788 = vpop.f32.mrf.mxu0
        %v789 = vadd.f32 %v730, %v788
        %v790 = vpop.f32.mrf.mxu0
        %v791 = vadd.f32 %v730, %v790
        %792 = vmatmul.bf16.gmra.mxu0 %v705
        %v793 = vpop.f32.mrf.mxu0
        %v794 = vadd.f32 %v730, %v793
        %v795 = vpop.f32.mrf.mxu0
        %v796 = vadd.f32 %v730, %v795
        %797 = vmatmul.bf16.gmra.mxu0 %v706
        %v798 = vpop.f32.mrf.mxu0
        %v799 = vadd.f32 %v730, %v798
        %v800 = vpop.f32.mrf.mxu0
        %v801 = vadd.f32 %v730, %v800
        %802 = vmatmul.bf16.gmra.mxu0 %v707
        %v803 = vpop.f32.mrf.mxu0
        %v804 = vadd.f32 %v730, %v803
        %v805 = vpop.f32.mrf.mxu0
        %v806 = vadd.f32 %v730, %v805
        %807 = vmatmul.bf16.gmra.mxu0 %v708
        %v808 = vpop.f32.mrf.mxu0
        %v809 = vadd.f32 %v730, %v808
        %v810 = vpop.f32.mrf.mxu0
        %v811 = vadd.f32 %v730, %v810
        %812 = vmatmul.bf16.gmra.mxu0 %v709
        %v813 = vpop.f32.mrf.mxu0
        %v814 = vadd.f32 %v730, %v813
        %v815 = vpop.f32.mrf.mxu0
        %v816 = vadd.f32 %v730, %v815
        %817 = vmatmul.bf16.gmra.mxu0 %v710
        %v818 = vpop.f32.mrf.mxu0
        %v819 = vadd.f32 %v730, %v818
        %v820 = vpop.f32.mrf.mxu0
        %v821 = vadd.f32 %v730, %v820
        %822 = vmatmul.bf16.gmra.mxu0 %v711
        %v823 = vpop.f32.mrf.mxu0
        %v824 = vadd.f32 %v730, %v823
        %v825 = vpop.f32.mrf.mxu0
        %v826 = vadd.f32 %v730, %v825
        %827 = vmatmul.bf16.gmra.mxu0 %v712
        %v828 = vpop.f32.mrf.mxu0
        %v829 = vadd.f32 %v730, %v828
        %v830 = vpop.f32.mrf.mxu0
        %v831 = vadd.f32 %v730, %v830
        %832 = vmatmul.bf16.gmra.mxu0 %v713
        %v833 = vpop.f32.mrf.mxu0
        %v834 = vadd.f32 %v730, %v833
        %v835 = vpop.f32.mrf.mxu0
        %836 = vdwg.mxu0
        %v837 = vadd.f32 %v789, %v238
        %v838 = vadd.f32 %v791, %v239
        %v839 = vadd.f32 %v794, %v240
        %v840 = vadd.f32 %v796, %v241
        %v841 = vadd.f32 %v799, %v242
        %v842 = vadd.f32 %v801, %v243
        %v843 = vadd.f32 %v804, %v244
        %v844 = vadd.f32 %v806, %v245
        %v845 = vadd.f32 %v809, %v246
        %v846 = vadd.f32 %v811, %v247
        %v847 = vadd.f32 %v814, %v248
        %v848 = vadd.f32 %v816, %v249
        %v849 = vadd.f32 %v819, %v250
        %v850 = vadd.f32 %v821, %v251
        %v851 = vadd.f32 %v824, %v252
        %v852 = vadd.f32 %v826, %v253
        %v853 = vadd.f32 %v829, %v254
        %v854 = vadd.f32 %v831, %v255
        %v855 = vadd.f32 %v834, %v256
        %856 = vst [vmem:[%s235] sm:$0xff] %v837
        %857 = vst [vmem:[%s235 + $0x8] sm:$0xff] %v838
        %858 = vst [vmem:[%s235 + $0x10] sm:$0xff] %v839
        %859 = vst [vmem:[%s235 + $0x18] sm:$0xff] %v840
        %860 = vst [vmem:[%s235 + $0x20] sm:$0xff] %v841
        %861 = vst [vmem:[%s235 + $0x28] sm:$0xff] %v842
        %862 = vst [vmem:[%s235 + $0x30] sm:$0xff] %v843
        %863 = vst [vmem:[%s235 + $0x38] sm:$0xff] %v844
        %864 = vst [vmem:[%s235 + $0x40] sm:$0xff] %v845
        %865 = vst [vmem:[%s235 + $0x48] sm:$0xff] %v846
        %866 = vst [vmem:[%s235 + $0x50] sm:$0xff] %v847
        %867 = vst [vmem:[%s235 + $0x58] sm:$0xff] %v848
        %868 = vst [vmem:[%s235 + $0x60] sm:$0xff] %v849
        %869 = vst [vmem:[%s235 + $0x68] sm:$0xff] %v850
        %870 = vst [vmem:[%s235 + $0x70] sm:$0xff] %v851
        %871 = vst [vmem:[%s235 + $0x78] sm:$0xff] %v852
        %872 = vst [vmem:[%s235 + $0x80] sm:$0xff] %v853
        %873 = vst [vmem:[%s235 + $0x88] sm:$0xff] %v854
        %874 = vst [vmem:[%s235 + $0x90] sm:$0xff] %v855
        %s875 = sand.u32 %s111, 1
        %s876 = scalar_lea.sflag [#allocation4], %s875
        %s877 = sand.u32 %s111, 1
        %s878 = smul.addr %s877, 152
        %s879 = scalar_lea.vmem [#allocation8], %s878
        // Predicated region
        $region45: #{tpu_custom_call.1} parent=31 // pred_check
          %p880 = pneg %p121
        $region46: #{tpu_custom_call.1} parent=31 // pred_check_branch
          %882 = sbr.rel (%p880) target = $region48
        $region47: #{tpu_custom_call.1} parent=31 // pred_region
          %s883 = smul.u32 19, %s25
          %885 = vsyncadd %s876, 0
          %s886 = sadd.s32 %s26, %s883
          %s887 = smul.addr %s886, 8
          %s888 = scalar_lea.hbm %s3, %s887
          %s889 = sshll.u32 %s879, 4
          %s890 = int_to_ptr.vmem [resolvable:$true] %s889
          %s891 = sshll.u32 %s888, 4
          %s892 = int_to_ptr.hbm [resolvable:$true] %s891
          %897 = dma.vmem_to_hbm [thread:$0]  %s890, 2432, %s892, %s876, 128, 128, 8
        $region48: #{tpu_custom_call.1} parent=31 // pred_fallthru
          _
      $region32: #{tpu_custom_call.1} parent=5 // pred_fallthru
        _
      %p898 = scmp.le.s32.totalorder 2, %s16
      // Predicated region
      $region49: #{tpu_custom_call.1} parent=5 // pred_check
        %p899 = pneg %p898
      $region50: #{tpu_custom_call.1} parent=5 // pred_check_branch
        %901 = sbr.rel (%p899) target = $region52
      $region51: #{tpu_custom_call.1} parent=5 // pred_region
        %s902 = ssub.s32 %s16, 2
        // Predicated region
        $region53: #{tpu_custom_call.1} parent=51 // pred_check
          %p903 = pneg %p127
        $region54: #{tpu_custom_call.1} parent=51 // pred_check_branch
          %905 = sbr.rel (%p903) target = $region56
        $region55: #{tpu_custom_call.1} parent=51 // pred_region
          %s906 = sand.u32 %s112, 1
          %s907 = scalar_lea.sflag [#allocation4], %s906
          %s908 = sand.u32 %s112, 1
          %s909 = smul.addr %s908, 152
          %s910 = scalar_lea.vmem [#allocation8], %s909
          %912 = dma.done %s907, 2432
        $region56: #{tpu_custom_call.1} parent=51 // pred_fallthru
          _
      $region52: #{tpu_custom_call.1} parent=5 // pred_fallthru
        _
    $region6: #{tpu_custom_call.1} parent=1 // loop_footer
      %s20 = sadd.s32 1, %s16
    $region7: #{tpu_custom_call.1} parent=1 // loop_footer_branch
      %15 = sbr.rel target = $region3
    $region8: #{tpu_custom_call.1} parent=1 // loop_exit
      _
    %913 = vsyncpa [#allocation3], 1
    %s914 = scalar_lea.sflag [#allocation3], 1
    %915 = vsyncpa %s914, 1
    %916 = vsyncpa [#allocation6], 1
    %917 = vsyncpa [#allocation4], 1
    %s918 = scalar_lea.sflag [#allocation4], 1
    %919 = vsyncpa %s918, 1

</llo_original>
